<compile_context>
chip_gen: v6e
topology: v6e:2x2x1
jax: 0.10.0
libtpu: 0.0.40
codegen_flags: <defaults>
</compile_context>

<pallas_src>
import jax
import jax.numpy as jnp
from jax.experimental import pallas as pl
from jax.experimental.pallas import tpu as pltpu


# -----------------------------------------------------------------------------
# Stage 1 kernel: shared 1x1 conv (+bias) on [f_s | f_e], channel attention,
# f_e_att, and channel mean/max.  All tensors are (C, N) with N on lanes.
#   x_ref:  (1, 128, 2N)   [f_s | f_e] stacked along lanes
#   wc_ref: (in_c, 128)    bc_ref: (in_c, 1)
#   w1_ref: (in_c//8, in_c)  b1_ref: (in_c//8, 1)
#   w2_ref: (in_c, in_c//8)  b2_ref: (in_c, 1)
# outputs:
#   fs_conv_ref: (1, in_c, N)   fe_att_ref: (1, in_c, N)   sp_in_ref: (1, 2, N)
# -----------------------------------------------------------------------------
def _inject_stage1_kernel(x_ref, wc_ref, bc_ref, w1_ref, b1_ref, w2_ref, b2_ref,
                          fs_conv_ref, fe_att_ref, sp_in_ref):
    n = fs_conv_ref.shape[-1]

    # one matmul for both f_s and f_e (shared weight), lane-dense output
    conv = jnp.dot(wc_ref[...], x_ref[0], preferred_element_type=jnp.float32)
    conv = conv + bc_ref[...]                                  # (in_c, 2N)
    fs_conv = conv[:, :n]                                      # (in_c, N)
    fe_conv = conv[:, n:]                                      # (in_c, N)

    # channel attention: GAP -> 1x1 -> ReLU -> 1x1 -> sigmoid
    gap = jnp.mean(fe_conv, axis=1, keepdims=True)             # (in_c, 1)
    h = jnp.dot(w1_ref[...], gap, preferred_element_type=jnp.float32) + b1_ref[...]
    h = jnp.maximum(h, 0.0)                                    # (in_c//8, 1)
    ca = jnp.dot(w2_ref[...], h, preferred_element_type=jnp.float32) + b2_ref[...]
    ca = 1.0 / (1.0 + jnp.exp(-ca))                            # (in_c, 1)

    fe_att = ca * fe_conv                                      # (in_c, N)

    avg = jnp.mean(fe_att, axis=0, keepdims=True)              # (1, N)
    mx = jnp.max(fe_att, axis=0, keepdims=True)                # (1, N)

    fs_conv_ref[0] = fs_conv
    fe_att_ref[0] = fe_att
    sp_in_ref[0, 0:1, :] = avg
    sp_in_ref[0, 1:2, :] = mx


def _stage1(x_cat, wc, bc, w1, b1, w2, b2, n):
    B, c_in, two_n = x_cat.shape
    in_c = wc.shape[0]
    hid = w1.shape[0]
    out_shape = (
        jax.ShapeDtypeStruct((B, in_c, n), jnp.float32),
        jax.ShapeDtypeStruct((B, in_c, n), jnp.float32),
        jax.ShapeDtypeStruct((B, 2, n), jnp.float32),
    )
    return pl.pallas_call(
        _inject_stage1_kernel,
        out_shape=out_shape,
        grid=(B,),
        in_specs=[
            pl.BlockSpec((1, c_in, two_n), lambda b: (b, 0, 0)),
            pl.BlockSpec((in_c, c_in), lambda b: (0, 0)),
            pl.BlockSpec((in_c, 1), lambda b: (0, 0)),
            pl.BlockSpec((hid, in_c), lambda b: (0, 0)),
            pl.BlockSpec((hid, 1), lambda b: (0, 0)),
            pl.BlockSpec((in_c, hid), lambda b: (0, 0)),
            pl.BlockSpec((in_c, 1), lambda b: (0, 0)),
        ],
        out_specs=[
            pl.BlockSpec((1, in_c, n), lambda b: (b, 0, 0)),
            pl.BlockSpec((1, in_c, n), lambda b: (b, 0, 0)),
            pl.BlockSpec((1, 2, n), lambda b: (b, 0, 0)),
        ],
        compiler_params=pltpu.CompilerParams(dimension_semantics=("parallel",)),
    )(x_cat, wc, bc, w1, b1, w2, b2)


# -----------------------------------------------------------------------------
# Stage 2 kernel: spatial attention (7x7 conv as 98-tap multiply-reduce) +
# sigmoid, apply to f_e_att, then output 1x1 conv with the concat folded into
# two matmuls (split weight) + bias.
#   patch_ref: (1, 98, N)  wsp_ref: (98, 1)
#   fs_conv_ref/fe_att_ref: (1, in_c, N)
#   wo_s_ref/wo_e_ref: (in_c, in_c)  bo_ref: (in_c, 1)
#   out_ref: (1, in_c, N)
# -----------------------------------------------------------------------------
def _inject_stage2_kernel(patch_ref, wsp_ref, fs_conv_ref, fe_att_ref,
                          wo_s_ref, wo_e_ref, bo_ref, out_ref):
    # 7x7 conv: weighted sum over the 98 taps (VPU mul + sublane reduce)
    sa = jnp.sum(wsp_ref[...] * patch_ref[0], axis=0, keepdims=True)   # (1, N)
    sa = 1.0 / (1.0 + jnp.exp(-sa))                                    # sigmoid
    fe_att = fe_att_ref[0] * sa                                        # (in_c, N)

    acc = jnp.dot(wo_s_ref[...], fs_conv_ref[0], preferred_element_type=jnp.float32)
    acc = acc + jnp.dot(wo_e_ref[...], fe_att, preferred_element_type=jnp.float32)
    out_ref[0] = acc + bo_ref[...]


def _stage2(patches, wsp, fs_conv, fe_att, wo_s, wo_e, bo, n):
    B = patches.shape[0]
    in_c = wo_s.shape[0]
    return pl.pallas_call(
        _inject_stage2_kernel,
        out_shape=jax.ShapeDtypeStruct((B, in_c, n), jnp.float32),
        grid=(B,),
        in_specs=[
            pl.BlockSpec((1, 98, n), lambda b: (b, 0, 0)),
            pl.BlockSpec((98, 1), lambda b: (0, 0)),
            pl.BlockSpec((1, in_c, n), lambda b: (b, 0, 0)),
            pl.BlockSpec((1, in_c, n), lambda b: (b, 0, 0)),
            pl.BlockSpec((in_c, in_c), lambda b: (0, 0)),
            pl.BlockSpec((in_c, in_c), lambda b: (0, 0)),
            pl.BlockSpec((in_c, 1), lambda b: (0, 0)),
        ],
        out_specs=pl.BlockSpec((1, in_c, n), lambda b: (b, 0, 0)),
        compiler_params=pltpu.CompilerParams(dimension_semantics=("parallel",)),
    )(patches, wsp, fs_conv, fe_att, wo_s, wo_e, bo)


# -----------------------------------------------------------------------------
# Plain-JAX glue + full forward
# -----------------------------------------------------------------------------
def edge_information_injector_forward(params, f_s, f_e):
    B, c_s, H, W = f_s.shape                     # c_s = 128
    in_c = params["wc"].shape[0]
    N = H * W

    # adaptive_avg_pool2d(f_e, (H, W)) — divisible case (uniform bins).
    # TODO(synk): general non-divisible adaptive_avg_pool2d bin pattern.
    _, c_e, He, We = f_e.shape
    kh, kw = He // H, We // W
    f_e_p = f_e.reshape(B, c_e, H, kh, W, kw).mean(axis=(3, 5))

    # stack f_s | f_e along the lane (pixel) axis so the shared conv is one matmul
    x_cat = jnp.concatenate(
        [f_s.reshape(B, c_s, N), f_e_p.reshape(B, c_e, N)], axis=-1)   # (B,128,2N)

    fs_conv, fe_att, sp_in = _stage1(
        x_cat, params["wc"], params["bc"],
        params["w1"], params["b1"], params["w2"], params["b2"], N)

    # im2col for the 7x7 spatial-attention conv (tiny (B,2,H,W) tensor; glue)
    sp = sp_in.reshape(B, 2, H, W)
    sp_pad = jnp.pad(sp, ((0, 0), (0, 0), (3, 3), (3, 3)))
    cols = [sp_pad[:, :, ky:ky + H, kx:kx + W]
            for ky in range(7) for kx in range(7)]
    patches = jnp.stack(cols, axis=2).reshape(B, 2 * 49, N)            # (B,98,N)

    out = _stage2(patches, params["wsp"], fs_conv, fe_att,
                  params["wo_s"], params["wo_e"], params["bo"], N)
    return out.reshape(B, in_c, H, W)


# Pure-JAX reference (NCHW, mirrors the PyTorch forward) for a sanity check.
def _reference(params, f_s, f_e):
    hp = jax.lax.Precision.HIGHEST
    B, c_s, H, W = f_s.shape
    in_c = params["wc"].shape[0]
    _, c_e, He, We = f_e.shape
    f_e_p = f_e.reshape(B, c_e, H, He // H, W, We // W).mean(axis=(3, 5))

    def conv1x1(x, w, b):
        y = jnp.einsum("oi,bihw->bohw", w, x, precision=hp)
        return y if b is None else y + b.reshape(1, -1, 1, 1)

    fs_conv = conv1x1(f_s, params["wc"], params["bc"])
    fe_conv = conv1x1(f_e_p, params["wc"], params["bc"])

    gap = fe_conv.mean(axis=(2, 3))                                    # (B, in_c)
    h = jnp.maximum(gap @ params["w1"].T + params["b1"][:, 0], 0.0)
    ca = jax.nn.sigmoid(h @ params["w2"].T + params["b2"][:, 0])       # (B, in_c)
    fe_att = ca[:, :, None, None] * fe_conv

    avg = fe_att.mean(axis=1, keepdims=True)
    mx = fe_att.max(axis=1, keepdims=True)
    sp_in = jnp.concatenate([avg, mx], axis=1)
    wsp4 = params["wsp"].reshape(1, 2, 7, 7)
    sa = jax.lax.conv_general_dilated(
        sp_in, wsp4, (1, 1), ((3, 3), (3, 3)),
        dimension_numbers=("NCHW", "OIHW", "NCHW"), precision=hp)
    fe_att = fe_att * jax.nn.sigmoid(sa)

    fused = jnp.concatenate([fs_conv, fe_att], axis=1)
    wo = jnp.concatenate([params["wo_s"], params["wo_e"]], axis=1)
    return conv1x1(fused, wo, params["bo"])


def init_params(key, in_c=128):
    # module constraint: cat has 2*in_c channels, output_conv expects 128+in_c
    assert in_c == 128
    hid = in_c // 8
    ks = jax.random.split(key, 9)

    def w(k, shape, scale=0.05):
        return jax.random.normal(k, shape, jnp.float32) * scale

    wo = w(ks[7], (in_c, 128 + in_c))
    return dict(
        wc=w(ks[0], (in_c, 128)),        bc=w(ks[1], (in_c, 1)),
        w1=w(ks[2], (hid, in_c)),        b1=w(ks[3], (hid, 1)),
        w2=w(ks[4], (in_c, hid)),        b2=w(ks[5], (in_c, 1)),
        wsp=w(ks[6], (2 * 49, 1)),                       # 7x7 conv, no bias
        wo_s=wo[:, :in_c], wo_e=wo[:, in_c:],            # split output conv
        bo=w(ks[8], (in_c, 1)),
    )


if __name__ == "__main__":
    B, in_c, H, W = 2, 128, 16, 16
    He, We = 32, 32
    key = jax.random.PRNGKey(0)
    kp, k1, k2 = jax.random.split(key, 3)
    params = init_params(kp, in_c)
    f_s = jax.random.normal(k1, (B, 128, H, W), jnp.float32)
    f_e = jax.random.normal(k2, (B, 128, He, We), jnp.float32)

    fwd = jax.jit(edge_information_injector_forward)
    out = fwd(params, f_s, f_e)
    jax.block_until_ready(out)

    assert out.shape == (B, in_c, H, W)
    assert bool(jnp.all(jnp.isfinite(out)))

    ref = _reference(params, f_s, f_e)
    max_err = float(jnp.max(jnp.abs(out - ref)))
    assert jnp.allclose(out, ref, atol=2e-2, rtol=2e-2), max_err
    print("KERNEL_OK")
</pallas_src>

<mosaic_0001>
module attributes {stable_mosaic.version = 11 : i64} {
  func.func @_inject_stage1_kernel(%arg0: i32, %arg1: memref<1x128x512xf32, #tpu.memory_space<vmem>>, %arg2: memref<128x128xf32, #tpu.memory_space<vmem>>, %arg3: memref<128x1xf32, #tpu.memory_space<vmem>>, %arg4: memref<16x128xf32, #tpu.memory_space<vmem>>, %arg5: memref<16x1xf32, #tpu.memory_space<vmem>>, %arg6: memref<128x16xf32, #tpu.memory_space<vmem>>, %arg7: memref<128x1xf32, #tpu.memory_space<vmem>>, %arg8: memref<1x128x256xf32, #tpu.memory_space<vmem>>, %arg9: memref<1x128x256xf32, #tpu.memory_space<vmem>>, %arg10: memref<1x2x256xf32, #tpu.memory_space<vmem>>) attributes {dimension_semantics = [#tpu.dimension_semantics<parallel>], iteration_bounds = array<i64: 2>, scalar_prefetch = 0 : i64, scratch_operands = 0 : i64, tpu.core_type = #tpu.core_type<tc>, window_params = [{transform_indices = @transform_0, window_bounds = array<i64: 1, 128, 512>}, {pipeline_mode = #tpu.pipeline_mode<synchronous>, transform_indices = @transform_1, window_bounds = array<i64: 128, 128>}, {pipeline_mode = #tpu.pipeline_mode<synchronous>, transform_indices = @transform_2, window_bounds = array<i64: 128, 1>}, {pipeline_mode = #tpu.pipeline_mode<synchronous>, transform_indices = @transform_3, window_bounds = array<i64: 16, 128>}, {pipeline_mode = #tpu.pipeline_mode<synchronous>, transform_indices = @transform_4, window_bounds = array<i64: 16, 1>}, {pipeline_mode = #tpu.pipeline_mode<synchronous>, transform_indices = @transform_5, window_bounds = array<i64: 128, 16>}, {pipeline_mode = #tpu.pipeline_mode<synchronous>, transform_indices = @transform_6, window_bounds = array<i64: 128, 1>}, {transform_indices = @transform_7, window_bounds = array<i64: 1, 128, 256>}, {transform_indices = @transform_8, window_bounds = array<i64: 1, 128, 256>}, {transform_indices = @transform_9, window_bounds = array<i64: 1, 2, 256>}]} {
    %c0 = arith.constant 0 : index
    %c0_0 = arith.constant 0 : index
    %0 = vector.load %arg2[%c0, %c0_0] : memref<128x128xf32, #tpu.memory_space<vmem>>, vector<128x128xf32>
    %c0_1 = arith.constant 0 : index
    %c0_2 = arith.constant 0 : index
    %c0_3 = arith.constant 0 : index
    %1 = vector.load %arg1[%c0_1, %c0_2, %c0_3] : memref<1x128x512xf32, #tpu.memory_space<vmem>>, vector<1x128x512xf32>
    %2 = vector.shape_cast %1 : vector<1x128x512xf32> to vector<128x512xf32>
    %cst = arith.constant dense<0.000000e+00> : vector<128x512xf32>
    %3 = tpu.matmul %0, %2, %cst {dimension_numbers = #tpu.dot_dimension_numbers<[1], [0], [0], [1], [0, 0, 1, 1], [], []>} : vector<128x128xf32>, vector<128x512xf32>, vector<128x512xf32> -> vector<128x512xf32>
    %c0_4 = arith.constant 0 : index
    %c0_5 = arith.constant 0 : index
    %4 = vector.load %arg3[%c0_4, %c0_5] : memref<128x1xf32, #tpu.memory_space<vmem>>, vector<128x1xf32>
    %5 = vector.broadcast %4 : vector<128x1xf32> to vector<128x512xf32>
    %6 = arith.addf %3, %5 : vector<128x512xf32>
    %7 = vector.extract_strided_slice %6 {offsets = [0, 0], sizes = [128, 256], strides = [1, 1]} : vector<128x512xf32> to vector<128x256xf32>
    %8 = vector.extract_strided_slice %6 {offsets = [0, 256], sizes = [128, 256], strides = [1, 1]} : vector<128x512xf32> to vector<128x256xf32>
    %cst_6 = arith.constant dense<0.000000e+00> : vector<128xf32>
    %9 = vector.multi_reduction <add>, %8, %cst_6 [1] : vector<128x256xf32> to vector<128xf32>
    %10 = vector.shape_cast %9 : vector<128xf32> to vector<128x1xf32>
    %cst_7 = arith.constant 2.560000e+02 : f32
    %11 = vector.broadcast %cst_7 : f32 to vector<128x1xf32>
    %12 = arith.divf %10, %11 : vector<128x1xf32>
    %c0_8 = arith.constant 0 : index
    %c0_9 = arith.constant 0 : index
    %13 = vector.load %arg4[%c0_8, %c0_9] : memref<16x128xf32, #tpu.memory_space<vmem>>, vector<16x128xf32>
    %cst_10 = arith.constant dense<0.000000e+00> : vector<16x1xf32>
    %14 = tpu.matmul %13, %12, %cst_10 {dimension_numbers = #tpu.dot_dimension_numbers<[1], [0], [0], [1], [0, 0, 1, 1], [], []>} : vector<16x128xf32>, vector<128x1xf32>, vector<16x1xf32> -> vector<16x1xf32>
    %c0_11 = arith.constant 0 : index
    %c0_12 = arith.constant 0 : index
    %15 = vector.load %arg5[%c0_11, %c0_12] : memref<16x1xf32, #tpu.memory_space<vmem>>, vector<16x1xf32>
    %16 = arith.addf %14, %15 : vector<16x1xf32>
    %cst_13 = arith.constant 0.000000e+00 : f32
    %17 = vector.broadcast %cst_13 : f32 to vector<16x1xf32>
    %18 = arith.maximumf %16, %17 : vector<16x1xf32>
    %c0_14 = arith.constant 0 : index
    %c0_15 = arith.constant 0 : index
    %19 = vector.load %arg6[%c0_14, %c0_15] : memref<128x16xf32, #tpu.memory_space<vmem>>, vector<128x16xf32>
    %cst_16 = arith.constant dense<0.000000e+00> : vector<128x1xf32>
    %20 = tpu.matmul %19, %18, %cst_16 {dimension_numbers = #tpu.dot_dimension_numbers<[1], [0], [0], [1], [0, 0, 1, 1], [], []>} : vector<128x16xf32>, vector<16x1xf32>, vector<128x1xf32> -> vector<128x1xf32>
    %c0_17 = arith.constant 0 : index
    %c0_18 = arith.constant 0 : index
    %21 = vector.load %arg7[%c0_17, %c0_18] : memref<128x1xf32, #tpu.memory_space<vmem>>, vector<128x1xf32>
    %22 = arith.addf %20, %21 : vector<128x1xf32>
    %cst_19 = arith.constant 0.000000e+00 : f32
    %23 = vector.broadcast %cst_19 : f32 to vector<128x1xf32>
    %24 = arith.subf %23, %22 : vector<128x1xf32>
    %25 = math.exp %24 : vector<128x1xf32>
    %cst_20 = arith.constant 1.000000e+00 : f32
    %26 = vector.broadcast %cst_20 : f32 to vector<128x1xf32>
    %27 = arith.addf %26, %25 : vector<128x1xf32>
    %cst_21 = arith.constant 1.000000e+00 : f32
    %28 = vector.broadcast %cst_21 : f32 to vector<128x1xf32>
    %29 = arith.divf %28, %27 : vector<128x1xf32>
    %30 = vector.broadcast %29 : vector<128x1xf32> to vector<128x256xf32>
    %31 = arith.mulf %30, %8 : vector<128x256xf32>
    %cst_22 = arith.constant dense<0.000000e+00> : vector<256xf32>
    %32 = vector.multi_reduction <add>, %31, %cst_22 [0] : vector<128x256xf32> to vector<256xf32>
    %33 = vector.shape_cast %32 : vector<256xf32> to vector<1x256xf32>
    %cst_23 = arith.constant 1.280000e+02 : f32
    %34 = vector.broadcast %cst_23 : f32 to vector<1x256xf32>
    %35 = arith.divf %33, %34 : vector<1x256xf32>
    %cst_24 = arith.constant dense<0xFF800000> : vector<256xf32>
    %36 = vector.multi_reduction <maximumf>, %31, %cst_24 [0] : vector<128x256xf32> to vector<256xf32>
    %37 = vector.shape_cast %36 : vector<256xf32> to vector<1x256xf32>
    %c0_25 = arith.constant 0 : index
    %c0_26 = arith.constant 0 : index
    %c0_27 = arith.constant 0 : index
    %38 = vector.load %arg8[%c0_25, %c0_26, %c0_27] : memref<1x128x256xf32, #tpu.memory_space<vmem>>, vector<1x128x256xf32>
    %39 = vector.shape_cast %38 : vector<1x128x256xf32> to vector<128x256xf32>
    %40 = vector.shape_cast %7 : vector<128x256xf32> to vector<1x128x256xf32>
    tpu.vector_store %arg8[%c0_25, %c0_26, %c0_27], %40 {strides = array<i32>} : memref<1x128x256xf32, #tpu.memory_space<vmem>>, vector<1x128x256xf32>,
    %c0_28 = arith.constant 0 : index
    %c0_29 = arith.constant 0 : index
    %c0_30 = arith.constant 0 : index
    %41 = vector.load %arg9[%c0_28, %c0_29, %c0_30] : memref<1x128x256xf32, #tpu.memory_space<vmem>>, vector<1x128x256xf32>
    %42 = vector.shape_cast %41 : vector<1x128x256xf32> to vector<128x256xf32>
    %43 = vector.shape_cast %31 : vector<128x256xf32> to vector<1x128x256xf32>
    tpu.vector_store %arg9[%c0_28, %c0_29, %c0_30], %43 {strides = array<i32>} : memref<1x128x256xf32, #tpu.memory_space<vmem>>, vector<1x128x256xf32>,
    %c0_31 = arith.constant 0 : index
    %c0_32 = arith.constant 0 : index
    %c0_33 = arith.constant 0 : index
    %44 = vector.load %arg10[%c0_31, %c0_32, %c0_33] : memref<1x2x256xf32, #tpu.memory_space<vmem>>, vector<1x1x256xf32>
    %45 = vector.shape_cast %44 : vector<1x1x256xf32> to vector<1x256xf32>
    %46 = vector.shape_cast %35 : vector<1x256xf32> to vector<1x1x256xf32>
    tpu.vector_store %arg10[%c0_31, %c0_32, %c0_33], %46 {strides = array<i32>} : memref<1x2x256xf32, #tpu.memory_space<vmem>>, vector<1x1x256xf32>,
    %c0_34 = arith.constant 0 : index
    %c1 = arith.constant 1 : index
    %c0_35 = arith.constant 0 : index
    %47 = vector.load %arg10[%c0_34, %c1, %c0_35] : memref<1x2x256xf32, #tpu.memory_space<vmem>>, vector<1x1x256xf32>
    %48 = vector.shape_cast %47 : vector<1x1x256xf32> to vector<1x256xf32>
    %49 = vector.shape_cast %37 : vector<1x256xf32> to vector<1x1x256xf32>
    tpu.vector_store %arg10[%c0_34, %c1, %c0_35], %49 {strides = array<i32>} : memref<1x2x256xf32, #tpu.memory_space<vmem>>, vector<1x1x256xf32>,
    return
  }
  func.func @transform_0(%arg0: i32) -> (i32, i32, i32) {
    %c0_i32 = arith.constant 0 : i32
    %c0_i32_0 = arith.constant 0 : i32
    %c0_i32_1 = arith.constant 0 : i32
    return %arg0, %c0_i32, %c0_i32_0 : i32, i32, i32
  }
  func.func @transform_1(%arg0: i32) -> (i32, i32) {
    %c0_i32 = arith.constant 0 : i32
    %c0_i32_0 = arith.constant 0 : i32
    %c0_i32_1 = arith.constant 0 : i32
    return %c0_i32, %c0_i32_0 : i32, i32
  }
  func.func @transform_2(%arg0: i32) -> (i32, i32) {
    %c0_i32 = arith.constant 0 : i32
    %c0_i32_0 = arith.constant 0 : i32
    %c0_i32_1 = arith.constant 0 : i32
    return %c0_i32, %c0_i32_0 : i32, i32
  }
  func.func @transform_3(%arg0: i32) -> (i32, i32) {
    %c0_i32 = arith.constant 0 : i32
    %c0_i32_0 = arith.constant 0 : i32
    %c0_i32_1 = arith.constant 0 : i32
    return %c0_i32, %c0_i32_0 : i32, i32
  }
  func.func @transform_4(%arg0: i32) -> (i32, i32) {
    %c0_i32 = arith.constant 0 : i32
    %c0_i32_0 = arith.constant 0 : i32
    %c0_i32_1 = arith.constant 0 : i32
    return %c0_i32, %c0_i32_0 : i32, i32
  }
  func.func @transform_5(%arg0: i32) -> (i32, i32) {
    %c0_i32 = arith.constant 0 : i32
    %c0_i32_0 = arith.constant 0 : i32
    %c0_i32_1 = arith.constant 0 : i32
    return %c0_i32, %c0_i32_0 : i32, i32
  }
  func.func @transform_6(%arg0: i32) -> (i32, i32) {
    %c0_i32 = arith.constant 0 : i32
    %c0_i32_0 = arith.constant 0 : i32
    %c0_i32_1 = arith.constant 0 : i32
    return %c0_i32, %c0_i32_0 : i32, i32
  }
  func.func @transform_7(%arg0: i32) -> (i32, i32, i32) {
    %c0_i32 = arith.constant 0 : i32
    %c0_i32_0 = arith.constant 0 : i32
    %c0_i32_1 = arith.constant 0 : i32
    return %arg0, %c0_i32, %c0_i32_0 : i32, i32, i32
  }
  func.func @transform_8(%arg0: i32) -> (i32, i32, i32) {
    %c0_i32 = arith.constant 0 : i32
    %c0_i32_0 = arith.constant 0 : i32
    %c0_i32_1 = arith.constant 0 : i32
    return %arg0, %c0_i32, %c0_i32_0 : i32, i32, i32
  }
  func.func @transform_9(%arg0: i32) -> (i32, i32, i32) {
    %c0_i32 = arith.constant 0 : i32
    %c0_i32_0 = arith.constant 0 : i32
    %c0_i32_1 = arith.constant 0 : i32
    return %arg0, %c0_i32, %c0_i32_0 : i32, i32, i32
  }
}

module attributes {stable_mosaic.version = 11 : i64} {
  func.func @_inject_stage2_kernel(%arg0: i32, %arg1: memref<1x98x256xf32, #tpu.memory_space<vmem>>, %arg2: memref<98x1xf32, #tpu.memory_space<vmem>>, %arg3: memref<1x128x256xf32, #tpu.memory_space<vmem>>, %arg4: memref<1x128x256xf32, #tpu.memory_space<vmem>>, %arg5: memref<128x128xf32, #tpu.memory_space<vmem>>, %arg6: memref<128x128xf32, #tpu.memory_space<vmem>>, %arg7: memref<128x1xf32, #tpu.memory_space<vmem>>, %arg8: memref<1x128x256xf32, #tpu.memory_space<vmem>>) attributes {dimension_semantics = [#tpu.dimension_semantics<parallel>], iteration_bounds = array<i64: 2>, scalar_prefetch = 0 : i64, scratch_operands = 0 : i64, tpu.core_type = #tpu.core_type<tc>, window_params = [{transform_indices = @transform_0, window_bounds = array<i64: 1, 98, 256>}, {pipeline_mode = #tpu.pipeline_mode<synchronous>, transform_indices = @transform_1, window_bounds = array<i64: 98, 1>}, {transform_indices = @transform_2, window_bounds = array<i64: 1, 128, 256>}, {transform_indices = @transform_3, window_bounds = array<i64: 1, 128, 256>}, {pipeline_mode = #tpu.pipeline_mode<synchronous>, transform_indices = @transform_4, window_bounds = array<i64: 128, 128>}, {pipeline_mode = #tpu.pipeline_mode<synchronous>, transform_indices = @transform_5, window_bounds = array<i64: 128, 128>}, {pipeline_mode = #tpu.pipeline_mode<synchronous>, transform_indices = @transform_6, window_bounds = array<i64: 128, 1>}, {transform_indices = @transform_7, window_bounds = array<i64: 1, 128, 256>}]} {
    %c0 = arith.constant 0 : index
    %c0_0 = arith.constant 0 : index
    %0 = vector.load %arg2[%c0, %c0_0] : memref<98x1xf32, #tpu.memory_space<vmem>>, vector<98x1xf32>
    %c0_1 = arith.constant 0 : index
    %c0_2 = arith.constant 0 : index
    %c0_3 = arith.constant 0 : index
    %1 = vector.load %arg1[%c0_1, %c0_2, %c0_3] : memref<1x98x256xf32, #tpu.memory_space<vmem>>, vector<1x98x256xf32>
    %2 = vector.shape_cast %1 : vector<1x98x256xf32> to vector<98x256xf32>
    %3 = vector.broadcast %0 : vector<98x1xf32> to vector<98x256xf32>
    %4 = arith.mulf %3, %2 : vector<98x256xf32>
    %cst = arith.constant dense<0.000000e+00> : vector<256xf32>
    %5 = vector.multi_reduction <add>, %4, %cst [0] : vector<98x256xf32> to vector<256xf32>
    %6 = vector.shape_cast %5 : vector<256xf32> to vector<1x256xf32>
    %cst_4 = arith.constant 0.000000e+00 : f32
    %7 = vector.broadcast %cst_4 : f32 to vector<1x256xf32>
    %8 = arith.subf %7, %6 : vector<1x256xf32>
    %9 = math.exp %8 : vector<1x256xf32>
    %cst_5 = arith.constant 1.000000e+00 : f32
    %10 = vector.broadcast %cst_5 : f32 to vector<1x256xf32>
    %11 = arith.addf %10, %9 : vector<1x256xf32>
    %cst_6 = arith.constant 1.000000e+00 : f32
    %12 = vector.broadcast %cst_6 : f32 to vector<1x256xf32>
    %13 = arith.divf %12, %11 : vector<1x256xf32>
    %c0_7 = arith.constant 0 : index
    %c0_8 = arith.constant 0 : index
    %c0_9 = arith.constant 0 : index
    %14 = vector.load %arg4[%c0_7, %c0_8, %c0_9] : memref<1x128x256xf32, #tpu.memory_space<vmem>>, vector<1x128x256xf32>
    %15 = vector.shape_cast %14 : vector<1x128x256xf32> to vector<128x256xf32>
    %16 = vector.broadcast %13 : vector<1x256xf32> to vector<128x256xf32>
    %17 = arith.mulf %15, %16 : vector<128x256xf32>
    %c0_10 = arith.constant 0 : index
    %c0_11 = arith.constant 0 : index
    %18 = vector.load %arg5[%c0_10, %c0_11] : memref<128x128xf32, #tpu.memory_space<vmem>>, vector<128x128xf32>
    %c0_12 = arith.constant 0 : index
    %c0_13 = arith.constant 0 : index
    %c0_14 = arith.constant 0 : index
    %19 = vector.load %arg3[%c0_12, %c0_13, %c0_14] : memref<1x128x256xf32, #tpu.memory_space<vmem>>, vector<1x128x256xf32>
    %20 = vector.shape_cast %19 : vector<1x128x256xf32> to vector<128x256xf32>
    %cst_15 = arith.constant dense<0.000000e+00> : vector<128x256xf32>
    %21 = tpu.matmul %18, %20, %cst_15 {dimension_numbers = #tpu.dot_dimension_numbers<[1], [0], [0], [1], [0, 0, 1, 1], [], []>} : vector<128x128xf32>, vector<128x256xf32>, vector<128x256xf32> -> vector<128x256xf32>
    %c0_16 = arith.constant 0 : index
    %c0_17 = arith.constant 0 : index
    %22 = vector.load %arg6[%c0_16, %c0_17] : memref<128x128xf32, #tpu.memory_space<vmem>>, vector<128x128xf32>
    %cst_18 = arith.constant dense<0.000000e+00> : vector<128x256xf32>
    %23 = tpu.matmul %22, %17, %cst_18 {dimension_numbers = #tpu.dot_dimension_numbers<[1], [0], [0], [1], [0, 0, 1, 1], [], []>} : vector<128x128xf32>, vector<128x256xf32>, vector<128x256xf32> -> vector<128x256xf32>
    %24 = arith.addf %21, %23 : vector<128x256xf32>
    %c0_19 = arith.constant 0 : index
    %c0_20 = arith.constant 0 : index
    %25 = vector.load %arg7[%c0_19, %c0_20] : memref<128x1xf32, #tpu.memory_space<vmem>>, vector<128x1xf32>
    %26 = vector.broadcast %25 : vector<128x1xf32> to vector<128x256xf32>
    %27 = arith.addf %24, %26 : vector<128x256xf32>
    %c0_21 = arith.constant 0 : index
    %c0_22 = arith.constant 0 : index
    %c0_23 = arith.constant 0 : index
    %28 = vector.load %arg8[%c0_21, %c0_22, %c0_23] : memref<1x128x256xf32, #tpu.memory_space<vmem>>, vector<1x128x256xf32>
    %29 = vector.shape_cast %28 : vector<1x128x256xf32> to vector<128x256xf32>
    %30 = vector.shape_cast %27 : vector<128x256xf32> to vector<1x128x256xf32>
    tpu.vector_store %arg8[%c0_21, %c0_22, %c0_23], %30 {strides = array<i32>} : memref<1x128x256xf32, #tpu.memory_space<vmem>>, vector<1x128x256xf32>,
    return
  }
  func.func @transform_0(%arg0: i32) -> (i32, i32, i32) {
    %c0_i32 = arith.constant 0 : i32
    %c0_i32_0 = arith.constant 0 : i32
    %c0_i32_1 = arith.constant 0 : i32
    return %arg0, %c0_i32, %c0_i32_0 : i32, i32, i32
  }
  func.func @transform_1(%arg0: i32) -> (i32, i32) {
    %c0_i32 = arith.constant 0 : i32
    %c0_i32_0 = arith.constant 0 : i32
    %c0_i32_1 = arith.constant 0 : i32
    return %c0_i32, %c0_i32_0 : i32, i32
  }
  func.func @transform_2(%arg0: i32) -> (i32, i32, i32) {
    %c0_i32 = arith.constant 0 : i32
    %c0_i32_0 = arith.constant 0 : i32
    %c0_i32_1 = arith.constant 0 : i32
    return %arg0, %c0_i32, %c0_i32_0 : i32, i32, i32
  }
  func.func @transform_3(%arg0: i32) -> (i32, i32, i32) {
    %c0_i32 = arith.constant 0 : i32
    %c0_i32_0 = arith.constant 0 : i32
    %c0_i32_1 = arith.constant 0 : i32
    return %arg0, %c0_i32, %c0_i32_0 : i32, i32, i32
  }
  func.func @transform_4(%arg0: i32) -> (i32, i32) {
    %c0_i32 = arith.constant 0 : i32
    %c0_i32_0 = arith.constant 0 : i32
    %c0_i32_1 = arith.constant 0 : i32
    return %c0_i32, %c0_i32_0 : i32, i32
  }
  func.func @transform_5(%arg0: i32) -> (i32, i32) {
    %c0_i32 = arith.constant 0 : i32
    %c0_i32_0 = arith.constant 0 : i32
    %c0_i32_1 = arith.constant 0 : i32
    return %c0_i32, %c0_i32_0 : i32, i32
  }
  func.func @transform_6(%arg0: i32) -> (i32, i32) {
    %c0_i32 = arith.constant 0 : i32
    %c0_i32_0 = arith.constant 0 : i32
    %c0_i32_1 = arith.constant 0 : i32
    return %c0_i32, %c0_i32_0 : i32, i32
  }
  func.func @transform_7(%arg0: i32) -> (i32, i32, i32) {
    %c0_i32 = arith.constant 0 : i32
    %c0_i32_0 = arith.constant 0 : i32
    %c0_i32_1 = arith.constant 0 : i32
    return %arg0, %c0_i32, %c0_i32_0 : i32, i32, i32
  }
}

</mosaic_0001>

<llo_original>
// kernel: edge_information_injector_forward.2
$region0: #{edge_information_injector_forward.2}
  #allocation0 [shape = 'u32[]', space=smem, size = 0x4, offset = 0x4, fixed_abs, tag = 'smem constant byte address 0x4 - core index']
  #allocation1 [shape = 'u32[144,128]{1,0:T(1,128)}', space=vmem, size = 0x12000, scoped, tag = 'internal scratch']
  %s0 = inlined_call_operand.vmem [shape: f32[2,128,512], index: 0, kind: input, shape index: {}]
  %s1 = inlined_call_operand.vmem [shape: f32[128,128], index: 1, kind: input, shape index: {}]
  %s2 = inlined_call_operand.vmem [shape: f32[128,1], index: 2, kind: input, shape index: {}]
  %s3 = inlined_call_operand.vmem [shape: f32[16,128], index: 3, kind: input, shape index: {}]
  %s4 = inlined_call_operand.vmem [shape: f32[16,1], index: 4, kind: input, shape index: {}]
  %s5 = inlined_call_operand.vmem [shape: f32[128,16], index: 5, kind: input, shape index: {}]
  %s6 = inlined_call_operand.vmem [shape: f32[128,1], index: 6, kind: input, shape index: {}]
  %s7 = inlined_call_operand.vmem [shape: f32[2,128,256], index: 7, kind: output, shape index: {0}]
  %s8 = inlined_call_operand.vmem [shape: f32[2,128,256], index: 8, kind: output, shape index: {1}]
  %s9 = inlined_call_operand.vmem [shape: f32[2,2,256], index: 9, kind: output, shape index: {2}]
  %10 = xla_tuple %s7, %s8, %s9
  %s11 = sld [smem:[#allocation0]]
  $region77: #{edge_information_injector_forward.2} parent=0
    _
  %s13 = ssub.s32 1, %s11
  %s14 = scalar_select 0, %s13, %s11
  loop: start=0, step=1, limit=4
  $region2: #{edge_information_injector_forward.2} parent=0 // loop_pre_header
    _
  $region3: #{edge_information_injector_forward.2} parent=0 // loop_header
    %s16 = sphi 0, %s20
    %p17 = scmp.ge.s32.totalorder %s16, 4
    %s26 = sphi 0, %s28
    %s29 = sphi 0, %s26
    %s30 = sphi 0, %s29
    %s46 = sphi 0, %s30
    %s50 = sphi 0, %s50
    %s52 = sphi 0, %s50
    %s53 = sphi 0, %s52
    %s67 = sphi 0, %s53
    %s71 = sphi 0, %s71
    %s73 = sphi 0, %s71
    %s74 = sphi 0, %s73
    %s88 = sphi 0, %s74
    %s92 = sphi 0, %s92
    %s94 = sphi 0, %s92
    %s95 = sphi 0, %s94
    %s109 = sphi 0, %s95
    %s113 = sphi 0, %s113
    %s115 = sphi 0, %s113
    %s116 = sphi 0, %s115
    %s130 = sphi 0, %s116
    %s134 = sphi 0, %s134
    %s136 = sphi 0, %s134
    %s137 = sphi 0, %s136
    %s151 = sphi 0, %s137
    %s155 = sphi 0, %s155
    %s157 = sphi 0, %s155
    %s158 = sphi 0, %s157
    %s172 = sphi 0, %s158
    %s178 = sphi 0, %s180
    %s181 = sphi 0, %s178
    %s182 = sphi 0, %s181
    %s198 = sphi 0, %s182
    %s204 = sphi 0, %s206
    %s207 = sphi 0, %s204
    %s208 = sphi 0, %s207
    %s224 = sphi 0, %s208
    %s230 = sphi 0, %s232
    %s233 = sphi 0, %s230
    %s234 = sphi 0, %s233
    %s250 = sphi 0, %s234
  $region4: #{edge_information_injector_forward.2} parent=0 // loop_header_branch
    %19 = sbr.rel (%p17) target = $region8
  $region5: #{edge_information_injector_forward.2} parent=0 // loop_body
    %s21 = ssub.s32 %s16, 1
    %s22 = ssub.s32 %s16, 2
    %s23 = sadd.s32 %s16, 1
    %s24 = ssub.s32 %s16, %s23
    %p25 = scmp.eq.s32.totalorder %s24, 0
    %s27 = sadd.s32 %s26, 1
    %s28 = scalar_select %p25, %s26, %s27
    %p31 = pneg %p25
    %p32 = scmp.eq.s32.totalorder %s16, 1
    %p33 = por %p31, %p32
    %p34 = scmp.ne.s32.totalorder %s26, %s29
    %p35 = scmp.eq.s32.totalorder %s16, 0
    %p36 = por %p34, %p35
    %p37 = scmp.ne.s32.totalorder %s26, %s29
    %p38 = scmp.eq.s32.totalorder %s21, 1
    %p39 = por %p37, %p38
    %p40 = scmp.ne.s32.totalorder %s29, %s30
    %p41 = scmp.eq.s32.totalorder %s21, 0
    %p42 = por %p40, %p41
    %p43 = scmp.ne.s32.totalorder %s29, %s30
    %p44 = scmp.eq.s32.totalorder %s22, 1
    %p45 = por %p43, %p44
    %p47 = scmp.ne.s32.totalorder %s30, %s46
    %p48 = scmp.eq.s32.totalorder %s22, 0
    %p49 = por %p47, %p48
    %s51 = sadd.s32 %s50, 1
    %p54 = scmp.eq.s32.totalorder %s16, 1
    %p55 = scmp.ne.s32.totalorder %s50, %s52
    %p56 = scmp.eq.s32.totalorder %s16, 0
    %p57 = por %p55, %p56
    %p58 = scmp.ne.s32.totalorder %s50, %s52
    %p59 = scmp.eq.s32.totalorder %s21, 1
    %p60 = por %p58, %p59
    %p61 = scmp.ne.s32.totalorder %s52, %s53
    %p62 = scmp.eq.s32.totalorder %s21, 0
    %p63 = por %p61, %p62
    %p64 = scmp.ne.s32.totalorder %s52, %s53
    %p65 = scmp.eq.s32.totalorder %s22, 1
    %p66 = por %p64, %p65
    %p68 = scmp.ne.s32.totalorder %s53, %s67
    %p69 = scmp.eq.s32.totalorder %s22, 0
    %p70 = por %p68, %p69
    %s72 = sadd.s32 %s71, 1
    %p75 = scmp.eq.s32.totalorder %s16, 1
    %p76 = scmp.ne.s32.totalorder %s71, %s73
    %p77 = scmp.eq.s32.totalorder %s16, 0
    %p78 = por %p76, %p77
    %p79 = scmp.ne.s32.totalorder %s71, %s73
    %p80 = scmp.eq.s32.totalorder %s21, 1
    %p81 = por %p79, %p80
    %p82 = scmp.ne.s32.totalorder %s73, %s74
    %p83 = scmp.eq.s32.totalorder %s21, 0
    %p84 = por %p82, %p83
    %p85 = scmp.ne.s32.totalorder %s73, %s74
    %p86 = scmp.eq.s32.totalorder %s22, 1
    %p87 = por %p85, %p86
    %p89 = scmp.ne.s32.totalorder %s74, %s88
    %p90 = scmp.eq.s32.totalorder %s22, 0
    %p91 = por %p89, %p90
    %s93 = sadd.s32 %s92, 1
    %p96 = scmp.eq.s32.totalorder %s16, 1
    %p97 = scmp.ne.s32.totalorder %s92, %s94
    %p98 = scmp.eq.s32.totalorder %s16, 0
    %p99 = por %p97, %p98
    %p100 = scmp.ne.s32.totalorder %s92, %s94
    %p101 = scmp.eq.s32.totalorder %s21, 1
    %p102 = por %p100, %p101
    %p103 = scmp.ne.s32.totalorder %s94, %s95
    %p104 = scmp.eq.s32.totalorder %s21, 0
    %p105 = por %p103, %p104
    %p106 = scmp.ne.s32.totalorder %s94, %s95
    %p107 = scmp.eq.s32.totalorder %s22, 1
    %p108 = por %p106, %p107
    %p110 = scmp.ne.s32.totalorder %s95, %s109
    %p111 = scmp.eq.s32.totalorder %s22, 0
    %p112 = por %p110, %p111
    %s114 = sadd.s32 %s113, 1
    %p117 = scmp.eq.s32.totalorder %s16, 1
    %p118 = scmp.ne.s32.totalorder %s113, %s115
    %p119 = scmp.eq.s32.totalorder %s16, 0
    %p120 = por %p118, %p119
    %p121 = scmp.ne.s32.totalorder %s113, %s115
    %p122 = scmp.eq.s32.totalorder %s21, 1
    %p123 = por %p121, %p122
    %p124 = scmp.ne.s32.totalorder %s115, %s116
    %p125 = scmp.eq.s32.totalorder %s21, 0
    %p126 = por %p124, %p125
    %p127 = scmp.ne.s32.totalorder %s115, %s116
    %p128 = scmp.eq.s32.totalorder %s22, 1
    %p129 = por %p127, %p128
    %p131 = scmp.ne.s32.totalorder %s116, %s130
    %p132 = scmp.eq.s32.totalorder %s22, 0
    %p133 = por %p131, %p132
    %s135 = sadd.s32 %s134, 1
    %p138 = scmp.eq.s32.totalorder %s16, 1
    %p139 = scmp.ne.s32.totalorder %s134, %s136
    %p140 = scmp.eq.s32.totalorder %s16, 0
    %p141 = por %p139, %p140
    %p142 = scmp.ne.s32.totalorder %s134, %s136
    %p143 = scmp.eq.s32.totalorder %s21, 1
    %p144 = por %p142, %p143
    %p145 = scmp.ne.s32.totalorder %s136, %s137
    %p146 = scmp.eq.s32.totalorder %s21, 0
    %p147 = por %p145, %p146
    %p148 = scmp.ne.s32.totalorder %s136, %s137
    %p149 = scmp.eq.s32.totalorder %s22, 1
    %p150 = por %p148, %p149
    %p152 = scmp.ne.s32.totalorder %s137, %s151
    %p153 = scmp.eq.s32.totalorder %s22, 0
    %p154 = por %p152, %p153
    %s156 = sadd.s32 %s155, 1
    %p159 = scmp.eq.s32.totalorder %s16, 1
    %p160 = scmp.ne.s32.totalorder %s155, %s157
    %p161 = scmp.eq.s32.totalorder %s16, 0
    %p162 = por %p160, %p161
    %p163 = scmp.ne.s32.totalorder %s155, %s157
    %p164 = scmp.eq.s32.totalorder %s21, 1
    %p165 = por %p163, %p164
    %p166 = scmp.ne.s32.totalorder %s157, %s158
    %p167 = scmp.eq.s32.totalorder %s21, 0
    %p168 = por %p166, %p167
    %p169 = scmp.ne.s32.totalorder %s157, %s158
    %p170 = scmp.eq.s32.totalorder %s22, 1
    %p171 = por %p169, %p170
    %p173 = scmp.ne.s32.totalorder %s158, %s172
    %p174 = scmp.eq.s32.totalorder %s22, 0
    %p175 = por %p173, %p174
    %s176 = ssub.s32 %s16, %s23
    %p177 = scmp.eq.s32.totalorder %s176, 0
    %s179 = sadd.s32 %s178, 1
    %s180 = scalar_select %p177, %s178, %s179
    %p183 = pneg %p177
    %p184 = scmp.eq.s32.totalorder %s16, 1
    %p185 = por %p183, %p184
    %p186 = scmp.ne.s32.totalorder %s178, %s181
    %p187 = scmp.eq.s32.totalorder %s16, 0
    %p188 = por %p186, %p187
    %p189 = scmp.ne.s32.totalorder %s178, %s181
    %p190 = scmp.eq.s32.totalorder %s21, 1
    %p191 = por %p189, %p190
    %p192 = scmp.ne.s32.totalorder %s181, %s182
    %p193 = scmp.eq.s32.totalorder %s21, 0
    %p194 = por %p192, %p193
    %p195 = scmp.ne.s32.totalorder %s181, %s182
    %p196 = scmp.eq.s32.totalorder %s22, 1
    %p197 = por %p195, %p196
    %p199 = scmp.ne.s32.totalorder %s182, %s198
    %p200 = scmp.eq.s32.totalorder %s22, 0
    %p201 = por %p199, %p200
    %s202 = ssub.s32 %s16, %s23
    %p203 = scmp.eq.s32.totalorder %s202, 0
    %s205 = sadd.s32 %s204, 1
    %s206 = scalar_select %p203, %s204, %s205
    %p209 = pneg %p203
    %p210 = scmp.eq.s32.totalorder %s16, 1
    %p211 = por %p209, %p210
    %p212 = scmp.ne.s32.totalorder %s204, %s207
    %p213 = scmp.eq.s32.totalorder %s16, 0
    %p214 = por %p212, %p213
    %p215 = scmp.ne.s32.totalorder %s204, %s207
    %p216 = scmp.eq.s32.totalorder %s21, 1
    %p217 = por %p215, %p216
    %p218 = scmp.ne.s32.totalorder %s207, %s208
    %p219 = scmp.eq.s32.totalorder %s21, 0
    %p220 = por %p218, %p219
    %p221 = scmp.ne.s32.totalorder %s207, %s208
    %p222 = scmp.eq.s32.totalorder %s22, 1
    %p223 = por %p221, %p222
    %p225 = scmp.ne.s32.totalorder %s208, %s224
    %p226 = scmp.eq.s32.totalorder %s22, 0
    %p227 = por %p225, %p226
    %s228 = ssub.s32 %s16, %s23
    %p229 = scmp.eq.s32.totalorder %s228, 0
    %s231 = sadd.s32 %s230, 1
    %s232 = scalar_select %p229, %s230, %s231
    %p235 = pneg %p229
    %p236 = scmp.eq.s32.totalorder %s16, 1
    %p237 = por %p235, %p236
    %p238 = scmp.ne.s32.totalorder %s230, %s233
    %p239 = scmp.eq.s32.totalorder %s16, 0
    %p240 = por %p238, %p239
    %p241 = scmp.ne.s32.totalorder %s230, %s233
    %p242 = scmp.eq.s32.totalorder %s21, 1
    %p243 = por %p241, %p242
    %p244 = scmp.ne.s32.totalorder %s233, %s234
    %p245 = scmp.eq.s32.totalorder %s21, 0
    %p246 = por %p244, %p245
    %p247 = scmp.ne.s32.totalorder %s233, %s234
    %p248 = scmp.eq.s32.totalorder %s22, 1
    %p249 = por %p247, %p248
    %p251 = scmp.ne.s32.totalorder %s234, %s250
    %p252 = scmp.eq.s32.totalorder %s22, 0
    %p253 = por %p251, %p252
    %p254 = scmp.le.s32.totalorder 1, %s16
    %p255 = scmp.lt.s32.totalorder %s16, 3
    %p256 = pnand %p254, %p255
    %p257 = pneg %p256
    // Predicated region
    $region9: #{edge_information_injector_forward.2} parent=5 // pred_check
      _
    $region10: #{edge_information_injector_forward.2} parent=5 // pred_check_branch
      %259 = sbr.rel (%p256) target = $region12
    $region11: #{edge_information_injector_forward.2} parent=5 // pred_region
      %s260 = ssub.s32 %s16, 1
      // Predicated region
      $region13: #{edge_information_injector_forward.2} parent=11 // pred_check
        %p261 = pneg %p63
      $region14: #{edge_information_injector_forward.2} parent=11 // pred_check_branch
        %263 = sbr.rel (%p261) target = $region16
      $region15: #{edge_information_injector_forward.2} parent=11 // pred_region
        _
      $region16: #{edge_information_injector_forward.2} parent=11 // pred_fallthru
        _
      // Predicated region
      $region17: #{edge_information_injector_forward.2} parent=11 // pred_check
        %p264 = pneg %p84
      $region18: #{edge_information_injector_forward.2} parent=11 // pred_check_branch
        %266 = sbr.rel (%p264) target = $region20
      $region19: #{edge_information_injector_forward.2} parent=11 // pred_region
        _
      $region20: #{edge_information_injector_forward.2} parent=11 // pred_fallthru
        _
      // Predicated region
      $region21: #{edge_information_injector_forward.2} parent=11 // pred_check
        %p267 = pneg %p105
      $region22: #{edge_information_injector_forward.2} parent=11 // pred_check_branch
        %269 = sbr.rel (%p267) target = $region24
      $region23: #{edge_information_injector_forward.2} parent=11 // pred_region
        _
      $region24: #{edge_information_injector_forward.2} parent=11 // pred_fallthru
        _
      // Predicated region
      $region25: #{edge_information_injector_forward.2} parent=11 // pred_check
        %p270 = pneg %p126
      $region26: #{edge_information_injector_forward.2} parent=11 // pred_check_branch
        %272 = sbr.rel (%p270) target = $region28
      $region27: #{edge_information_injector_forward.2} parent=11 // pred_region
        _
      $region28: #{edge_information_injector_forward.2} parent=11 // pred_fallthru
        _
      // Predicated region
      $region29: #{edge_information_injector_forward.2} parent=11 // pred_check
        %p273 = pneg %p147
      $region30: #{edge_information_injector_forward.2} parent=11 // pred_check_branch
        %275 = sbr.rel (%p273) target = $region32
      $region31: #{edge_information_injector_forward.2} parent=11 // pred_region
        _
      $region32: #{edge_information_injector_forward.2} parent=11 // pred_fallthru
        _
      // Predicated region
      $region33: #{edge_information_injector_forward.2} parent=11 // pred_check
        %p276 = pneg %p168
      $region34: #{edge_information_injector_forward.2} parent=11 // pred_check_branch
        %278 = sbr.rel (%p276) target = $region36
      $region35: #{edge_information_injector_forward.2} parent=11 // pred_region
        _
      $region36: #{edge_information_injector_forward.2} parent=11 // pred_fallthru
        _
    $region12: #{edge_information_injector_forward.2} parent=5 // pred_fallthru
      _
    %p279 = scmp.lt.s32.totalorder %s16, 2
    // Predicated region
    $region37: #{edge_information_injector_forward.2} parent=5 // pred_check
      %p280 = pneg %p279
    $region38: #{edge_information_injector_forward.2} parent=5 // pred_check_branch
      %282 = sbr.rel (%p280) target = $region40
    $region39: #{edge_information_injector_forward.2} parent=5 // pred_region
      // Predicated region
      $region41: #{edge_information_injector_forward.2} parent=39 // pred_check
        %p283 = pneg %p36
      $region42: #{edge_information_injector_forward.2} parent=39 // pred_check_branch
        %285 = sbr.rel (%p283) target = $region44
      $region43: #{edge_information_injector_forward.2} parent=39 // pred_region
        %p286 = scmp.lt.s32.totalorder %s16, 1
        %s287 = scalar_select %p286, %s16, 1
        %s288 = smul.addr %s287, 64
        %s289 = smul.addr %s288, 8
        %s290 = scalar_lea.vmem %s0, %s289
      $region44: #{edge_information_injector_forward.2} parent=39 // pred_fallthru
        _
    $region40: #{edge_information_injector_forward.2} parent=5 // pred_fallthru
      _
    %p291 = scmp.le.s32.totalorder 1, %s16
    %p292 = scmp.lt.s32.totalorder %s16, 3
    %p293 = pnand %p291, %p292
    %p294 = pneg %p293
    // Predicated region
    $region45: #{edge_information_injector_forward.2} parent=5 // pred_check
      _
    $region46: #{edge_information_injector_forward.2} parent=5 // pred_check_branch
      %296 = sbr.rel (%p293) target = $region48
    $region47: #{edge_information_injector_forward.2} parent=5 // pred_region
      %s297 = ssub.s32 %s16, 1
      %p298 = scmp.lt.s32.totalorder %s21, 1
      %s299 = scalar_select %p298, %s21, 1
      %s300 = smul.addr %s299, 64
      %s301 = smul.addr %s300, 8
      %s302 = scalar_lea.vmem %s0, %s301
      %p303 = pneg %p42
      %p304 = pneg %p39
      %p305 = pneg %p63
      %p306 = pneg %p60
      %p307 = pneg %p84
      %p308 = pneg %p81
      %p309 = pneg %p105
      %p310 = pneg %p102
      %p311 = pneg %p126
      %p312 = pneg %p123
      %p313 = pneg %p147
      %p314 = pneg %p144
      %p315 = pneg %p168
      %p316 = pneg %p165
      %p317 = pneg %p194
      %p318 = pneg %p191
      %p319 = scmp.lt.s32.totalorder %s21, 1
      %s320 = scalar_select %p319, %s21, 1
      %s321 = smul.addr %s320, 32
      %s322 = smul.addr %s321, 8
      %s323 = scalar_lea.vmem %s7, %s322
      %p324 = pneg %p220
      %p325 = pneg %p217
      %p326 = scmp.lt.s32.totalorder %s21, 1
      %s327 = scalar_select %p326, %s21, 1
      %s328 = smul.addr %s327, 32
      %s329 = smul.addr %s328, 8
      %s330 = scalar_lea.vmem %s8, %s329
      %p331 = pneg %p246
      %p332 = pneg %p243
      %p333 = scmp.lt.s32.totalorder %s21, 1
      %s334 = scalar_select %p333, %s21, 1
      %s335 = smul.addr %s334, 2
      %s336 = smul.addr %s335, 2
      %s337 = scalar_lea.vmem %s9, %s336
      %p338 = scmp.lt.s32.totalorder %s21, 1
      %s339 = scalar_select %p338, %s21, 1
      %s340 = smul.addr %s339, 64
      %s341 = smul.addr %s340, 8
      %s342 = scalar_lea.vmem %s0, %s341
      %p343 = scmp.lt.s32.totalorder %s21, 1
      %s344 = scalar_select %p343, %s21, 1
      %s345 = smul.addr %s344, 32
      %s346 = smul.addr %s345, 8
      %s347 = scalar_lea.vmem %s7, %s346
      %p348 = scmp.lt.s32.totalorder %s21, 1
      %s349 = scalar_select %p348, %s21, 1
      %s350 = smul.addr %s349, 32
      %s351 = smul.addr %s350, 8
      %s352 = scalar_lea.vmem %s8, %s351
      %p353 = scmp.lt.s32.totalorder %s21, 1
      %s354 = scalar_select %p353, %s21, 1
      %s355 = smul.addr %s354, 2
      %s356 = smul.addr %s355, 2
      %s357 = scalar_lea.vmem %s9, %s356
      %v358 = vld [vmem:[%s1] sm:$0xff]
      %v359 = vld [vmem:[%s1 + $0x8] sm:$0xff]
      %v360 = vld [vmem:[%s1 + $0x10] sm:$0xff]
      %v361 = vld [vmem:[%s1 + $0x18] sm:$0xff]
      %v362 = vld [vmem:[%s1 + $0x20] sm:$0xff]
      %v363 = vld [vmem:[%s1 + $0x28] sm:$0xff]
      %v364 = vld [vmem:[%s1 + $0x30] sm:$0xff]
      %v365 = vld [vmem:[%s1 + $0x38] sm:$0xff]
      %v366 = vld [vmem:[%s1 + $0x40] sm:$0xff]
      %v367 = vld [vmem:[%s1 + $0x48] sm:$0xff]
      %v368 = vld [vmem:[%s1 + $0x50] sm:$0xff]
      %v369 = vld [vmem:[%s1 + $0x58] sm:$0xff]
      %v370 = vld [vmem:[%s1 + $0x60] sm:$0xff]
      %v371 = vld [vmem:[%s1 + $0x68] sm:$0xff]
      %v372 = vld [vmem:[%s1 + $0x70] sm:$0xff]
      %v373 = vld [vmem:[%s1 + $0x78] sm:$0xff]
      %v374 = vld [vmem:[%s342] sm:$0xff]
      %v375 = vld [vmem:[%s342 + $0x8] sm:$0xff]
      %v376 = vld [vmem:[%s342 + $0x10] sm:$0xff]
      %v377 = vld [vmem:[%s342 + $0x18] sm:$0xff]
      %v378 = vld [vmem:[%s342 + $0x20] sm:$0xff]
      %v379 = vld [vmem:[%s342 + $0x28] sm:$0xff]
      %v380 = vld [vmem:[%s342 + $0x30] sm:$0xff]
      %v381 = vld [vmem:[%s342 + $0x38] sm:$0xff]
      %v382 = vld [vmem:[%s342 + $0x40] sm:$0xff]
      %v383 = vld [vmem:[%s342 + $0x48] sm:$0xff]
      %v384 = vld [vmem:[%s342 + $0x50] sm:$0xff]
      %v385 = vld [vmem:[%s342 + $0x58] sm:$0xff]
      %v386 = vld [vmem:[%s342 + $0x60] sm:$0xff]
      %v387 = vld [vmem:[%s342 + $0x68] sm:$0xff]
      %v388 = vld [vmem:[%s342 + $0x70] sm:$0xff]
      %v389 = vld [vmem:[%s342 + $0x78] sm:$0xff]
      %v390 = vld [vmem:[%s342 + $0x80] sm:$0xff]
      %v391 = vld [vmem:[%s342 + $0x88] sm:$0xff]
      %v392 = vld [vmem:[%s342 + $0x90] sm:$0xff]
      %v393 = vld [vmem:[%s342 + $0x98] sm:$0xff]
      %v394 = vld [vmem:[%s342 + $0xa0] sm:$0xff]
      %v395 = vld [vmem:[%s342 + $0xa8] sm:$0xff]
      %v396 = vld [vmem:[%s342 + $0xb0] sm:$0xff]
      %v397 = vld [vmem:[%s342 + $0xb8] sm:$0xff]
      %v398 = vld [vmem:[%s342 + $0xc0] sm:$0xff]
      %v399 = vld [vmem:[%s342 + $0xc8] sm:$0xff]
      %v400 = vld [vmem:[%s342 + $0xd0] sm:$0xff]
      %v401 = vld [vmem:[%s342 + $0xd8] sm:$0xff]
      %v402 = vld [vmem:[%s342 + $0xe0] sm:$0xff]
      %v403 = vld [vmem:[%s342 + $0xe8] sm:$0xff]
      %v404 = vld [vmem:[%s342 + $0xf0] sm:$0xff]
      %v405 = vld [vmem:[%s342 + $0xf8] sm:$0xff]
      %v406 = vld [vmem:[%s342 + $0x100] sm:$0xff]
      %v407 = vld [vmem:[%s342 + $0x108] sm:$0xff]
      %v408 = vld [vmem:[%s342 + $0x110] sm:$0xff]
      %v409 = vld [vmem:[%s342 + $0x118] sm:$0xff]
      %v410 = vld [vmem:[%s342 + $0x120] sm:$0xff]
      %v411 = vld [vmem:[%s342 + $0x128] sm:$0xff]
      %v412 = vld [vmem:[%s342 + $0x130] sm:$0xff]
      %v413 = vld [vmem:[%s342 + $0x138] sm:$0xff]
      %v414 = vld [vmem:[%s342 + $0x140] sm:$0xff]
      %v415 = vld [vmem:[%s342 + $0x148] sm:$0xff]
      %v416 = vld [vmem:[%s342 + $0x150] sm:$0xff]
      %v417 = vld [vmem:[%s342 + $0x158] sm:$0xff]
      %v418 = vld [vmem:[%s342 + $0x160] sm:$0xff]
      %v419 = vld [vmem:[%s342 + $0x168] sm:$0xff]
      %v420 = vld [vmem:[%s342 + $0x170] sm:$0xff]
      %v421 = vld [vmem:[%s342 + $0x178] sm:$0xff]
      %v422 = vld [vmem:[%s342 + $0x180] sm:$0xff]
      %v423 = vld [vmem:[%s342 + $0x188] sm:$0xff]
      %v424 = vld [vmem:[%s342 + $0x190] sm:$0xff]
      %v425 = vld [vmem:[%s342 + $0x198] sm:$0xff]
      %v426 = vld [vmem:[%s342 + $0x1a0] sm:$0xff]
      %v427 = vld [vmem:[%s342 + $0x1a8] sm:$0xff]
      %v428 = vld [vmem:[%s342 + $0x1b0] sm:$0xff]
      %v429 = vld [vmem:[%s342 + $0x1b8] sm:$0xff]
      %v430 = vld [vmem:[%s342 + $0x1c0] sm:$0xff]
      %v431 = vld [vmem:[%s342 + $0x1c8] sm:$0xff]
      %v432 = vld [vmem:[%s342 + $0x1d0] sm:$0xff]
      %v433 = vld [vmem:[%s342 + $0x1d8] sm:$0xff]
      %v434 = vld [vmem:[%s342 + $0x1e0] sm:$0xff]
      %v435 = vld [vmem:[%s342 + $0x1e8] sm:$0xff]
      %v436 = vld [vmem:[%s342 + $0x1f0] sm:$0xff]
      %v437 = vld [vmem:[%s342 + $0x1f8] sm:$0xff]
      %v438 = vld [vmem:[%s2] sm:$0xff]
      %v439 = vld [vmem:[%s2 + $0x8] sm:$0xff]
      %v440 = vld [vmem:[%s2 + $0x10] sm:$0xff]
      %v441 = vld [vmem:[%s2 + $0x18] sm:$0xff]
      %v442 = vld [vmem:[%s2 + $0x20] sm:$0xff]
      %v443 = vld [vmem:[%s2 + $0x28] sm:$0xff]
      %v444 = vld [vmem:[%s2 + $0x30] sm:$0xff]
      %v445 = vld [vmem:[%s2 + $0x38] sm:$0xff]
      %v446 = vld [vmem:[%s2 + $0x40] sm:$0xff]
      %v447 = vld [vmem:[%s2 + $0x48] sm:$0xff]
      %v448 = vld [vmem:[%s2 + $0x50] sm:$0xff]
      %v449 = vld [vmem:[%s2 + $0x58] sm:$0xff]
      %v450 = vld [vmem:[%s2 + $0x60] sm:$0xff]
      %v451 = vld [vmem:[%s2 + $0x68] sm:$0xff]
      %v452 = vld [vmem:[%s2 + $0x70] sm:$0xff]
      %v453 = vld [vmem:[%s2 + $0x78] sm:$0xff]
      %455 = vset.pattern.permute.xlu0 0
      %456 = vperm.xlu0 %455, %v438
      %v457 = vpop.permute.xlu0 %456
      %460 = vset.pattern.permute.xlu0 0
      %461 = vperm.xlu0 %460, %v439
      %v462 = vpop.permute.xlu0 %461
      %465 = vset.pattern.permute.xlu0 0
      %466 = vperm.xlu0 %465, %v440
      %v467 = vpop.permute.xlu0 %466
      %470 = vset.pattern.permute.xlu0 0
      %471 = vperm.xlu0 %470, %v441
      %v472 = vpop.permute.xlu0 %471
      %475 = vset.pattern.permute.xlu0 0
      %476 = vperm.xlu0 %475, %v442
      %v477 = vpop.permute.xlu0 %476
      %480 = vset.pattern.permute.xlu0 0
      %481 = vperm.xlu0 %480, %v443
      %v482 = vpop.permute.xlu0 %481
      %485 = vset.pattern.permute.xlu0 0
      %486 = vperm.xlu0 %485, %v444
      %v487 = vpop.permute.xlu0 %486
      %490 = vset.pattern.permute.xlu0 0
      %491 = vperm.xlu0 %490, %v445
      %v492 = vpop.permute.xlu0 %491
      %495 = vset.pattern.permute.xlu0 0
      %496 = vperm.xlu0 %495, %v446
      %v497 = vpop.permute.xlu0 %496
      %500 = vset.pattern.permute.xlu0 0
      %501 = vperm.xlu0 %500, %v447
      %v502 = vpop.permute.xlu0 %501
      %505 = vset.pattern.permute.xlu0 0
      %506 = vperm.xlu0 %505, %v448
      %v507 = vpop.permute.xlu0 %506
      %510 = vset.pattern.permute.xlu0 0
      %511 = vperm.xlu0 %510, %v449
      %v512 = vpop.permute.xlu0 %511
      %515 = vset.pattern.permute.xlu0 0
      %516 = vperm.xlu0 %515, %v450
      %v517 = vpop.permute.xlu0 %516
      %520 = vset.pattern.permute.xlu0 0
      %521 = vperm.xlu0 %520, %v451
      %v522 = vpop.permute.xlu0 %521
      %525 = vset.pattern.permute.xlu0 0
      %526 = vperm.xlu0 %525, %v452
      %v527 = vpop.permute.xlu0 %526
      %530 = vset.pattern.permute.xlu0 0
      %531 = vperm.xlu0 %530, %v453
      %v532 = vpop.permute.xlu0 %531
      %534 = vmatprep.subr.mxu0 %v435
      %535 = vmatpush1.msra.mxu0 %v434
      %536 = vmatprep.subr.mxu0 %v431
      %537 = vmatpush1.msra.mxu0 %v430
      %538 = vmatprep.subr.mxu0 %v427
      %539 = vmatpush1.msra.mxu0 %v426
      %540 = vmatprep.subr.mxu0 %v423
      %541 = vmatpush1.msra.mxu0 %v422
      %542 = vmatprep.subr.mxu0 %v419
      %543 = vmatpush1.msra.mxu0 %v418
      %544 = vmatprep.subr.mxu0 %v415
      %545 = vmatpush1.msra.mxu0 %v414
      %546 = vmatprep.subr.mxu0 %v411
      %547 = vmatpush1.msra.mxu0 %v410
      %548 = vmatprep.subr.mxu0 %v407
      %549 = vmatpush1.msra.mxu0 %v406
      %550 = vmatprep.subr.mxu0 %v403
      %551 = vmatpush1.msra.mxu0 %v402
      %552 = vmatprep.subr.mxu0 %v399
      %553 = vmatpush1.msra.mxu0 %v398
      %554 = vmatprep.subr.mxu0 %v395
      %555 = vmatpush1.msra.mxu0 %v394
      %556 = vmatprep.subr.mxu0 %v391
      %557 = vmatpush1.msra.mxu0 %v390
      %558 = vmatprep.subr.mxu0 %v387
      %559 = vmatpush1.msra.mxu0 %v386
      %560 = vmatprep.subr.mxu0 %v383
      %561 = vmatpush1.msra.mxu0 %v382
      %562 = vmatprep.subr.mxu0 %v379
      %563 = vmatpush1.msra.mxu0 %v378
      %564 = vmatprep.subr.mxu0 %v375
      %565 = vmatpush1.msra.mxu0 %v374
      %566 = vmatprep.subr.mxu0 0.0
      %567 = vmatpush2.msra.mxu0 0.0
      %568 = vmatprep.subr.mxu0 0.0
      %569 = vmatpush2.msra.mxu0 0.0
      %570 = vmatprep.subr.mxu0 0.0
      %571 = vmatpush2.msra.mxu0 0.0
      %572 = vmatprep.subr.mxu0 0.0
      %573 = vmatpush2.msra.mxu0 0.0
      %574 = vmatprep.subr.mxu0 0.0
      %575 = vmatpush2.msra.mxu0 0.0
      %576 = vmatprep.subr.mxu0 0.0
      %577 = vmatpush2.msra.mxu0 0.0
      %578 = vmatprep.subr.mxu0 0.0
      %579 = vmatpush2.msra.mxu0 0.0
      %580 = vmatprep.subr.mxu0 0.0
      %581 = vmatpush2.msra.mxu0 0.0
      %582 = vmatprep.subr.mxu0 0.0
      %583 = vmatpush2.msra.mxu0 0.0
      %584 = vmatprep.subr.mxu0 0.0
      %585 = vmatpush2.msra.mxu0 0.0
      %586 = vmatprep.subr.mxu0 0.0
      %587 = vmatpush2.msra.mxu0 0.0
      %588 = vmatprep.subr.mxu0 0.0
      %589 = vmatpush2.msra.mxu0 0.0
      %590 = vmatprep.subr.mxu0 0.0
      %591 = vmatpush2.msra.mxu0 0.0
      %592 = vmatprep.subr.mxu0 0.0
      %593 = vmatpush2.msra.mxu0 0.0
      %594 = vmatprep.subr.mxu0 0.0
      %595 = vmatpush2.msra.mxu0 0.0
      %596 = vmatprep.subr.mxu0 0.0
      %597 = vmatpush2.msra.mxu0 0.0
      %598 = vmatprep.mubr.f32.mxu0 0.0
      %599 = vmatmul.mubr.f32.gmra.mxu0 %v358
      %v600 = vpop.f32.mrf.mxu0
      %v601 = vadd.f32 %v457, %v600
      %v602 = vpop.f32.mrf.mxu0
      %v603 = vadd.f32 %v457, %v602
      %604 = vmatprep.mubr.f32.mxu0 0.0
      %605 = vmatmul.mubr.f32.gmra.mxu0 %v359
      %v606 = vpop.f32.mrf.mxu0
      %v607 = vadd.f32 %v462, %v606
      %v608 = vpop.f32.mrf.mxu0
      %v609 = vadd.f32 %v462, %v608
      %610 = vmatprep.mubr.f32.mxu0 0.0
      %611 = vmatmul.mubr.f32.gmra.mxu0 %v360
      %v612 = vpop.f32.mrf.mxu0
      %v613 = vadd.f32 %v467, %v612
      %v614 = vpop.f32.mrf.mxu0
      %v615 = vadd.f32 %v467, %v614
      %616 = vmatprep.mubr.f32.mxu0 0.0
      %617 = vmatmul.mubr.f32.gmra.mxu0 %v361
      %v618 = vpop.f32.mrf.mxu0
      %v619 = vadd.f32 %v472, %v618
      %v620 = vpop.f32.mrf.mxu0
      %v621 = vadd.f32 %v472, %v620
      %622 = vmatprep.mubr.f32.mxu0 0.0
      %623 = vmatmul.mubr.f32.gmra.mxu0 %v362
      %v624 = vpop.f32.mrf.mxu0
      %v625 = vadd.f32 %v477, %v624
      %v626 = vpop.f32.mrf.mxu0
      %v627 = vadd.f32 %v477, %v626
      %628 = vmatprep.mubr.f32.mxu0 0.0
      %629 = vmatmul.mubr.f32.gmra.mxu0 %v363
      %v630 = vpop.f32.mrf.mxu0
      %v631 = vadd.f32 %v482, %v630
      %v632 = vpop.f32.mrf.mxu0
      %v633 = vadd.f32 %v482, %v632
      %634 = vmatprep.mubr.f32.mxu0 0.0
      %635 = vmatmul.mubr.f32.gmra.mxu0 %v364
      %v636 = vpop.f32.mrf.mxu0
      %v637 = vadd.f32 %v487, %v636
      %v638 = vpop.f32.mrf.mxu0
      %v639 = vadd.f32 %v487, %v638
      %640 = vmatprep.mubr.f32.mxu0 0.0
      %641 = vmatmul.mubr.f32.gmra.mxu0 %v365
      %v642 = vpop.f32.mrf.mxu0
      %v643 = vadd.f32 %v492, %v642
      %v644 = vpop.f32.mrf.mxu0
      %v645 = vadd.f32 %v492, %v644
      %646 = vmatprep.mubr.f32.mxu0 0.0
      %647 = vmatmul.mubr.f32.gmra.mxu0 %v366
      %v648 = vpop.f32.mrf.mxu0
      %v649 = vadd.f32 %v497, %v648
      %v650 = vpop.f32.mrf.mxu0
      %v651 = vadd.f32 %v497, %v650
      %652 = vmatprep.mubr.f32.mxu0 0.0
      %653 = vmatmul.mubr.f32.gmra.mxu0 %v367
      %v654 = vpop.f32.mrf.mxu0
      %v655 = vadd.f32 %v502, %v654
      %v656 = vpop.f32.mrf.mxu0
      %v657 = vadd.f32 %v502, %v656
      %658 = vmatprep.mubr.f32.mxu0 0.0
      %659 = vmatmul.mubr.f32.gmra.mxu0 %v368
      %v660 = vpop.f32.mrf.mxu0
      %v661 = vadd.f32 %v507, %v660
      %v662 = vpop.f32.mrf.mxu0
      %v663 = vadd.f32 %v507, %v662
      %664 = vmatprep.mubr.f32.mxu0 0.0
      %665 = vmatmul.mubr.f32.gmra.mxu0 %v369
      %v666 = vpop.f32.mrf.mxu0
      %v667 = vadd.f32 %v512, %v666
      %v668 = vpop.f32.mrf.mxu0
      %v669 = vadd.f32 %v512, %v668
      %670 = vmatprep.mubr.f32.mxu0 0.0
      %671 = vmatmul.mubr.f32.gmra.mxu0 %v370
      %v672 = vpop.f32.mrf.mxu0
      %v673 = vadd.f32 %v517, %v672
      %v674 = vpop.f32.mrf.mxu0
      %v675 = vadd.f32 %v517, %v674
      %676 = vmatprep.mubr.f32.mxu0 0.0
      %677 = vmatmul.mubr.f32.gmra.mxu0 %v371
      %v678 = vpop.f32.mrf.mxu0
      %v679 = vadd.f32 %v522, %v678
      %v680 = vpop.f32.mrf.mxu0
      %v681 = vadd.f32 %v522, %v680
      %682 = vmatprep.mubr.f32.mxu0 0.0
      %683 = vmatmul.mubr.f32.gmra.mxu0 %v372
      %v684 = vpop.f32.mrf.mxu0
      %v685 = vadd.f32 %v527, %v684
      %v686 = vpop.f32.mrf.mxu0
      %v687 = vadd.f32 %v527, %v686
      %688 = vmatprep.mubr.f32.mxu0 0.0
      %689 = vmatmul.mubr.f32.gmra.mxu0 %v373
      %v690 = vpop.f32.mrf.mxu0
      %v691 = vadd.f32 %v532, %v690
      %v692 = vpop.f32.mrf.mxu0
      %v693 = vadd.f32 %v532, %v692
      %694 = vdwg.mxu0
      %695 = vmatprep.subr.mxu0 %v437
      %696 = vmatpush1.msra.mxu0 %v436
      %697 = vmatprep.subr.mxu0 %v433
      %698 = vmatpush1.msra.mxu0 %v432
      %699 = vmatprep.subr.mxu0 %v429
      %700 = vmatpush1.msra.mxu0 %v428
      %701 = vmatprep.subr.mxu0 %v425
      %702 = vmatpush1.msra.mxu0 %v424
      %703 = vmatprep.subr.mxu0 %v421
      %704 = vmatpush1.msra.mxu0 %v420
      %705 = vmatprep.subr.mxu0 %v417
      %706 = vmatpush1.msra.mxu0 %v416
      %707 = vmatprep.subr.mxu0 %v413
      %708 = vmatpush1.msra.mxu0 %v412
      %709 = vmatprep.subr.mxu0 %v409
      %710 = vmatpush1.msra.mxu0 %v408
      %711 = vmatprep.subr.mxu0 %v405
      %712 = vmatpush1.msra.mxu0 %v404
      %713 = vmatprep.subr.mxu0 %v401
      %714 = vmatpush1.msra.mxu0 %v400
      %715 = vmatprep.subr.mxu0 %v397
      %716 = vmatpush1.msra.mxu0 %v396
      %717 = vmatprep.subr.mxu0 %v393
      %718 = vmatpush1.msra.mxu0 %v392
      %719 = vmatprep.subr.mxu0 %v389
      %720 = vmatpush1.msra.mxu0 %v388
      %721 = vmatprep.subr.mxu0 %v385
      %722 = vmatpush1.msra.mxu0 %v384
      %723 = vmatprep.subr.mxu0 %v381
      %724 = vmatpush1.msra.mxu0 %v380
      %725 = vmatprep.subr.mxu0 %v377
      %726 = vmatpush1.msra.mxu0 %v376
      %727 = vmatprep.subr.mxu0 0.0
      %728 = vmatpush2.msra.mxu0 0.0
      %729 = vmatprep.subr.mxu0 0.0
      %730 = vmatpush2.msra.mxu0 0.0
      %731 = vmatprep.subr.mxu0 0.0
      %732 = vmatpush2.msra.mxu0 0.0
      %733 = vmatprep.subr.mxu0 0.0
      %734 = vmatpush2.msra.mxu0 0.0
      %735 = vmatprep.subr.mxu0 0.0
      %736 = vmatpush2.msra.mxu0 0.0
      %737 = vmatprep.subr.mxu0 0.0
      %738 = vmatpush2.msra.mxu0 0.0
      %739 = vmatprep.subr.mxu0 0.0
      %740 = vmatpush2.msra.mxu0 0.0
      %741 = vmatprep.subr.mxu0 0.0
      %742 = vmatpush2.msra.mxu0 0.0
      %743 = vmatprep.subr.mxu0 0.0
      %744 = vmatpush2.msra.mxu0 0.0
      %745 = vmatprep.subr.mxu0 0.0
      %746 = vmatpush2.msra.mxu0 0.0
      %747 = vmatprep.subr.mxu0 0.0
      %748 = vmatpush2.msra.mxu0 0.0
      %749 = vmatprep.subr.mxu0 0.0
      %750 = vmatpush2.msra.mxu0 0.0
      %751 = vmatprep.subr.mxu0 0.0
      %752 = vmatpush2.msra.mxu0 0.0
      %753 = vmatprep.subr.mxu0 0.0
      %754 = vmatpush2.msra.mxu0 0.0
      %755 = vmatprep.subr.mxu0 0.0
      %756 = vmatpush2.msra.mxu0 0.0
      %757 = vmatprep.subr.mxu0 0.0
      %758 = vmatpush2.msra.mxu0 0.0
      %759 = vmatprep.mubr.f32.mxu0 0.0
      %760 = vmatmul.mubr.f32.gmra.mxu0 %v358
      %v761 = vpop.f32.mrf.mxu0
      %v762 = vadd.f32 %v457, %v761
      %v763 = vpop.f32.mrf.mxu0
      %v764 = vadd.f32 %v457, %v763
      %765 = vmatprep.mubr.f32.mxu0 0.0
      %766 = vmatmul.mubr.f32.gmra.mxu0 %v359
      %v767 = vpop.f32.mrf.mxu0
      %v768 = vadd.f32 %v462, %v767
      %v769 = vpop.f32.mrf.mxu0
      %v770 = vadd.f32 %v462, %v769
      %771 = vmatprep.mubr.f32.mxu0 0.0
      %772 = vmatmul.mubr.f32.gmra.mxu0 %v360
      %v773 = vpop.f32.mrf.mxu0
      %v774 = vadd.f32 %v467, %v773
      %v775 = vpop.f32.mrf.mxu0
      %v776 = vadd.f32 %v467, %v775
      %777 = vmatprep.mubr.f32.mxu0 0.0
      %778 = vmatmul.mubr.f32.gmra.mxu0 %v361
      %v779 = vpop.f32.mrf.mxu0
      %v780 = vadd.f32 %v472, %v779
      %v781 = vpop.f32.mrf.mxu0
      %v782 = vadd.f32 %v472, %v781
      %783 = vmatprep.mubr.f32.mxu0 0.0
      %784 = vmatmul.mubr.f32.gmra.mxu0 %v362
      %v785 = vpop.f32.mrf.mxu0
      %v786 = vadd.f32 %v477, %v785
      %v787 = vpop.f32.mrf.mxu0
      %v788 = vadd.f32 %v477, %v787
      %789 = vmatprep.mubr.f32.mxu0 0.0
      %790 = vmatmul.mubr.f32.gmra.mxu0 %v363
      %v791 = vpop.f32.mrf.mxu0
      %v792 = vadd.f32 %v482, %v791
      %v793 = vpop.f32.mrf.mxu0
      %v794 = vadd.f32 %v482, %v793
      %795 = vmatprep.mubr.f32.mxu0 0.0
      %796 = vmatmul.mubr.f32.gmra.mxu0 %v364
      %v797 = vpop.f32.mrf.mxu0
      %v798 = vadd.f32 %v487, %v797
      %v799 = vpop.f32.mrf.mxu0
      %v800 = vadd.f32 %v487, %v799
      %801 = vmatprep.mubr.f32.mxu0 0.0
      %802 = vmatmul.mubr.f32.gmra.mxu0 %v365
      %v803 = vpop.f32.mrf.mxu0
      %v804 = vadd.f32 %v492, %v803
      %v805 = vpop.f32.mrf.mxu0
      %v806 = vadd.f32 %v492, %v805
      %807 = vmatprep.mubr.f32.mxu0 0.0
      %808 = vmatmul.mubr.f32.gmra.mxu0 %v366
      %v809 = vpop.f32.mrf.mxu0
      %v810 = vadd.f32 %v497, %v809
      %v811 = vpop.f32.mrf.mxu0
      %v812 = vadd.f32 %v497, %v811
      %813 = vmatprep.mubr.f32.mxu0 0.0
      %814 = vmatmul.mubr.f32.gmra.mxu0 %v367
      %v815 = vpop.f32.mrf.mxu0
      %v816 = vadd.f32 %v502, %v815
      %v817 = vpop.f32.mrf.mxu0
      %v818 = vadd.f32 %v502, %v817
      %819 = vmatprep.mubr.f32.mxu0 0.0
      %820 = vmatmul.mubr.f32.gmra.mxu0 %v368
      %v821 = vpop.f32.mrf.mxu0
      %v822 = vadd.f32 %v507, %v821
      %v823 = vpop.f32.mrf.mxu0
      %v824 = vadd.f32 %v507, %v823
      %825 = vmatprep.mubr.f32.mxu0 0.0
      %826 = vmatmul.mubr.f32.gmra.mxu0 %v369
      %v827 = vpop.f32.mrf.mxu0
      %v828 = vadd.f32 %v512, %v827
      %v829 = vpop.f32.mrf.mxu0
      %v830 = vadd.f32 %v512, %v829
      %831 = vmatprep.mubr.f32.mxu0 0.0
      %832 = vmatmul.mubr.f32.gmra.mxu0 %v370
      %v833 = vpop.f32.mrf.mxu0
      %v834 = vadd.f32 %v517, %v833
      %v835 = vpop.f32.mrf.mxu0
      %v836 = vadd.f32 %v517, %v835
      %837 = vmatprep.mubr.f32.mxu0 0.0
      %838 = vmatmul.mubr.f32.gmra.mxu0 %v371
      %v839 = vpop.f32.mrf.mxu0
      %v840 = vadd.f32 %v522, %v839
      %v841 = vpop.f32.mrf.mxu0
      %v842 = vadd.f32 %v522, %v841
      %843 = vmatprep.mubr.f32.mxu0 0.0
      %844 = vmatmul.mubr.f32.gmra.mxu0 %v372
      %v845 = vpop.f32.mrf.mxu0
      %v846 = vadd.f32 %v527, %v845
      %v847 = vpop.f32.mrf.mxu0
      %v848 = vadd.f32 %v527, %v847
      %849 = vmatprep.mubr.f32.mxu0 0.0
      %850 = vmatmul.mubr.f32.gmra.mxu0 %v373
      %v851 = vpop.f32.mrf.mxu0
      %v852 = vadd.f32 %v532, %v851
      %v853 = vpop.f32.mrf.mxu0
      %v854 = vadd.f32 %v532, %v853
      %855 = vdwg.mxu0
      %v856 = vadd.f32 %v762, %v764
      %857 = vadd.xlane.f32.xlu0 %v856
      %v858 = vpop.xlane.xlu0 %857
      %v859 = vadd.f32 %v768, %v770
      %860 = vadd.xlane.f32.xlu0 %v859
      %v861 = vpop.xlane.xlu0 %860
      %v862 = vadd.f32 %v774, %v776
      %863 = vadd.xlane.f32.xlu0 %v862
      %v864 = vpop.xlane.xlu0 %863
      %v865 = vadd.f32 %v780, %v782
      %866 = vadd.xlane.f32.xlu0 %v865
      %v867 = vpop.xlane.xlu0 %866
      %v868 = vadd.f32 %v786, %v788
      %869 = vadd.xlane.f32.xlu0 %v868
      %v870 = vpop.xlane.xlu0 %869
      %v871 = vadd.f32 %v792, %v794
      %872 = vadd.xlane.f32.xlu0 %v871
      %v873 = vpop.xlane.xlu0 %872
      %v874 = vadd.f32 %v798, %v800
      %875 = vadd.xlane.f32.xlu0 %v874
      %v876 = vpop.xlane.xlu0 %875
      %v877 = vadd.f32 %v804, %v806
      %878 = vadd.xlane.f32.xlu0 %v877
      %v879 = vpop.xlane.xlu0 %878
      %v880 = vadd.f32 %v810, %v812
      %881 = vadd.xlane.f32.xlu0 %v880
      %v882 = vpop.xlane.xlu0 %881
      %v883 = vadd.f32 %v816, %v818
      %884 = vadd.xlane.f32.xlu0 %v883
      %v885 = vpop.xlane.xlu0 %884
      %v886 = vadd.f32 %v822, %v824
      %887 = vadd.xlane.f32.xlu0 %v886
      %v888 = vpop.xlane.xlu0 %887
      %v889 = vadd.f32 %v828, %v830
      %890 = vadd.xlane.f32.xlu0 %v889
      %v891 = vpop.xlane.xlu0 %890
      %v892 = vadd.f32 %v834, %v836
      %893 = vadd.xlane.f32.xlu0 %v892
      %v894 = vpop.xlane.xlu0 %893
      %v895 = vadd.f32 %v840, %v842
      %896 = vadd.xlane.f32.xlu0 %v895
      %v897 = vpop.xlane.xlu0 %896
      %v898 = vadd.f32 %v846, %v848
      %899 = vadd.xlane.f32.xlu0 %v898
      %v900 = vpop.xlane.xlu0 %899
      %v901 = vadd.f32 %v852, %v854
      %902 = vadd.xlane.f32.xlu0 %v901
      %v903 = vpop.xlane.xlu0 %902
      %v904 = vrcp.pop 256.0
      %v905 = vmul.f32 %v858, %v904
      %v906 = vmul.f32 %v861, %v904
      %v907 = vmul.f32 %v864, %v904
      %v908 = vmul.f32 %v867, %v904
      %v909 = vmul.f32 %v870, %v904
      %v910 = vmul.f32 %v873, %v904
      %v911 = vmul.f32 %v876, %v904
      %v912 = vmul.f32 %v879, %v904
      %v913 = vmul.f32 %v882, %v904
      %v914 = vmul.f32 %v885, %v904
      %v915 = vmul.f32 %v888, %v904
      %v916 = vmul.f32 %v891, %v904
      %v917 = vmul.f32 %v894, %v904
      %v918 = vmul.f32 %v897, %v904
      %v919 = vmul.f32 %v900, %v904
      %v920 = vmul.f32 %v903, %v904
      %v921 = vld [vmem:[%s3] sm:$0xff]
      %v922 = vld [vmem:[%s3 + $0x8] sm:$0xff]
      %v923 = vld [vmem:[%s4] sm:$0xff]
      %v924 = vld [vmem:[%s4 + $0x8] sm:$0xff]
      %925 = vmatprep.subr.mxu0 0.0
      %926 = vmatpush1.msra.mxu0 %v920
      %927 = vmatprep.subr.mxu0 0.0
      %928 = vmatpush1.msra.mxu0 %v919
      %929 = vmatprep.subr.mxu0 0.0
      %930 = vmatpush1.msra.mxu0 %v918
      %931 = vmatprep.subr.mxu0 0.0
      %932 = vmatpush1.msra.mxu0 %v917
      %933 = vmatprep.subr.mxu0 0.0
      %934 = vmatpush1.msra.mxu0 %v916
      %935 = vmatprep.subr.mxu0 0.0
      %936 = vmatpush1.msra.mxu0 %v915
      %937 = vmatprep.subr.mxu0 0.0
      %938 = vmatpush1.msra.mxu0 %v914
      %939 = vmatprep.subr.mxu0 0.0
      %940 = vmatpush1.msra.mxu0 %v913
      %941 = vmatprep.subr.mxu0 0.0
      %942 = vmatpush1.msra.mxu0 %v912
      %943 = vmatprep.subr.mxu0 0.0
      %944 = vmatpush1.msra.mxu0 %v911
      %945 = vmatprep.subr.mxu0 0.0
      %946 = vmatpush1.msra.mxu0 %v910
      %947 = vmatprep.subr.mxu0 0.0
      %948 = vmatpush1.msra.mxu0 %v909
      %949 = vmatprep.subr.mxu0 0.0
      %950 = vmatpush1.msra.mxu0 %v908
      %951 = vmatprep.subr.mxu0 0.0
      %952 = vmatpush1.msra.mxu0 %v907
      %953 = vmatprep.subr.mxu0 0.0
      %954 = vmatpush1.msra.mxu0 %v906
      %955 = vmatprep.subr.mxu0 0.0
      %956 = vmatpush1.msra.mxu0 %v905
      %957 = vmatprep.subr.mxu0 0.0
      %958 = vmatpush2.msra.mxu0 0.0
      %959 = vmatprep.subr.mxu0 0.0
      %960 = vmatpush2.msra.mxu0 0.0
      %961 = vmatprep.subr.mxu0 0.0
      %962 = vmatpush2.msra.mxu0 0.0
      %963 = vmatprep.subr.mxu0 0.0
      %964 = vmatpush2.msra.mxu0 0.0
      %965 = vmatprep.subr.mxu0 0.0
      %966 = vmatpush2.msra.mxu0 0.0
      %967 = vmatprep.subr.mxu0 0.0
      %968 = vmatpush2.msra.mxu0 0.0
      %969 = vmatprep.subr.mxu0 0.0
      %970 = vmatpush2.msra.mxu0 0.0
      %971 = vmatprep.subr.mxu0 0.0
      %972 = vmatpush2.msra.mxu0 0.0
      %973 = vmatprep.subr.mxu0 0.0
      %974 = vmatpush2.msra.mxu0 0.0
      %975 = vmatprep.subr.mxu0 0.0
      %976 = vmatpush2.msra.mxu0 0.0
      %977 = vmatprep.subr.mxu0 0.0
      %978 = vmatpush2.msra.mxu0 0.0
      %979 = vmatprep.subr.mxu0 0.0
      %980 = vmatpush2.msra.mxu0 0.0
      %981 = vmatprep.subr.mxu0 0.0
      %982 = vmatpush2.msra.mxu0 0.0
      %983 = vmatprep.subr.mxu0 0.0
      %984 = vmatpush2.msra.mxu0 0.0
      %985 = vmatprep.subr.mxu0 0.0
      %986 = vmatpush2.msra.mxu0 0.0
      %987 = vmatprep.subr.mxu0 0.0
      %988 = vmatpush2.msra.mxu0 0.0
      %989 = vmatprep.mubr.f32.mxu0 0.0
      %990 = vmatmul.mubr.f32.gmra.mxu0 %v921
      %v991 = vpop.f32.mrf.mxu0
      %v992 = vadd.f32 %v923, %v991
      %v993 = vpop.f32.mrf.mxu0
      %994 = vmatprep.mubr.f32.mxu0 0.0
      %995 = vmatmul.mubr.f32.gmra.mxu0 %v922
      %v996 = vpop.f32.mrf.mxu0
      %v997 = vadd.f32 %v924, %v996
      %v998 = vpop.f32.mrf.mxu0
      %999 = vdwg.mxu0
      %v1000 = vmax.f32 %v992, 0.0
      %v1001 = vmax.f32 %v997, 0.0
      %v1002 = vld [vmem:[%s5] sm:$0xff]
      %v1003 = vld [vmem:[%s5 + $0x8] sm:$0xff]
      %v1004 = vld [vmem:[%s5 + $0x10] sm:$0xff]
      %v1005 = vld [vmem:[%s5 + $0x18] sm:$0xff]
      %v1006 = vld [vmem:[%s5 + $0x20] sm:$0xff]
      %v1007 = vld [vmem:[%s5 + $0x28] sm:$0xff]
      %v1008 = vld [vmem:[%s5 + $0x30] sm:$0xff]
      %v1009 = vld [vmem:[%s5 + $0x38] sm:$0xff]
      %v1010 = vld [vmem:[%s5 + $0x40] sm:$0xff]
      %v1011 = vld [vmem:[%s5 + $0x48] sm:$0xff]
      %v1012 = vld [vmem:[%s5 + $0x50] sm:$0xff]
      %v1013 = vld [vmem:[%s5 + $0x58] sm:$0xff]
      %v1014 = vld [vmem:[%s5 + $0x60] sm:$0xff]
      %v1015 = vld [vmem:[%s5 + $0x68] sm:$0xff]
      %v1016 = vld [vmem:[%s5 + $0x70] sm:$0xff]
      %v1017 = vld [vmem:[%s5 + $0x78] sm:$0xff]
      %v1018 = vld [vmem:[%s6] sm:$0xff]
      %v1019 = vld [vmem:[%s6 + $0x8] sm:$0xff]
      %v1020 = vld [vmem:[%s6 + $0x10] sm:$0xff]
      %v1021 = vld [vmem:[%s6 + $0x18] sm:$0xff]
      %v1022 = vld [vmem:[%s6 + $0x20] sm:$0xff]
      %v1023 = vld [vmem:[%s6 + $0x28] sm:$0xff]
      %v1024 = vld [vmem:[%s6 + $0x30] sm:$0xff]
      %v1025 = vld [vmem:[%s6 + $0x38] sm:$0xff]
      %v1026 = vld [vmem:[%s6 + $0x40] sm:$0xff]
      %v1027 = vld [vmem:[%s6 + $0x48] sm:$0xff]
      %v1028 = vld [vmem:[%s6 + $0x50] sm:$0xff]
      %v1029 = vld [vmem:[%s6 + $0x58] sm:$0xff]
      %v1030 = vld [vmem:[%s6 + $0x60] sm:$0xff]
      %v1031 = vld [vmem:[%s6 + $0x68] sm:$0xff]
      %v1032 = vld [vmem:[%s6 + $0x70] sm:$0xff]
      %v1033 = vld [vmem:[%s6 + $0x78] sm:$0xff]
      %vm1034 = vcmask 130048
      %v1036 = vsel %vm1034, %v1002, 0
      %v1039 = vsel %vm1034, %v1003, 0
      %v1042 = vsel %vm1034, %v1004, 0
      %v1045 = vsel %vm1034, %v1005, 0
      %v1048 = vsel %vm1034, %v1006, 0
      %v1051 = vsel %vm1034, %v1007, 0
      %v1054 = vsel %vm1034, %v1008, 0
      %v1057 = vsel %vm1034, %v1009, 0
      %v1060 = vsel %vm1034, %v1010, 0
      %v1063 = vsel %vm1034, %v1011, 0
      %v1066 = vsel %vm1034, %v1012, 0
      %v1069 = vsel %vm1034, %v1013, 0
      %v1072 = vsel %vm1034, %v1014, 0
      %v1075 = vsel %vm1034, %v1015, 0
      %v1078 = vsel %vm1034, %v1016, 0
      %v1081 = vsel %vm1034, %v1017, 0
      %1083 = vmatprep.subr.mxu0 0.0
      %1084 = vmatpush1.msra.mxu0 0.0
      %1085 = vmatprep.subr.mxu0 0.0
      %1086 = vmatpush1.msra.mxu0 0.0
      %1087 = vmatprep.subr.mxu0 0.0
      %1088 = vmatpush1.msra.mxu0 0.0
      %1089 = vmatprep.subr.mxu0 0.0
      %1090 = vmatpush1.msra.mxu0 0.0
      %1091 = vmatprep.subr.mxu0 0.0
      %1092 = vmatpush1.msra.mxu0 0.0
      %1093 = vmatprep.subr.mxu0 0.0
      %1094 = vmatpush1.msra.mxu0 0.0
      %1095 = vmatprep.subr.mxu0 0.0
      %1096 = vmatpush1.msra.mxu0 0.0
      %1097 = vmatprep.subr.mxu0 0.0
      %1098 = vmatpush1.msra.mxu0 0.0
      %1099 = vmatprep.subr.mxu0 0.0
      %1100 = vmatpush1.msra.mxu0 0.0
      %1101 = vmatprep.subr.mxu0 0.0
      %1102 = vmatpush1.msra.mxu0 0.0
      %1103 = vmatprep.subr.mxu0 0.0
      %1104 = vmatpush1.msra.mxu0 0.0
      %1105 = vmatprep.subr.mxu0 0.0
      %1106 = vmatpush1.msra.mxu0 0.0
      %1107 = vmatprep.subr.mxu0 0.0
      %1108 = vmatpush1.msra.mxu0 0.0
      %1109 = vmatprep.subr.mxu0 0.0
      %1110 = vmatpush1.msra.mxu0 0.0
      %1111 = vmatprep.subr.mxu0 0.0
      %1112 = vmatpush1.msra.mxu0 %v1001
      %1113 = vmatprep.subr.mxu0 0.0
      %1114 = vmatpush1.msra.mxu0 %v1000
      %1115 = vmatprep.subr.mxu0 0.0
      %1116 = vmatpush2.msra.mxu0 0.0
      %1117 = vmatprep.subr.mxu0 0.0
      %1118 = vmatpush2.msra.mxu0 0.0
      %1119 = vmatprep.subr.mxu0 0.0
      %1120 = vmatpush2.msra.mxu0 0.0
      %1121 = vmatprep.subr.mxu0 0.0
      %1122 = vmatpush2.msra.mxu0 0.0
      %1123 = vmatprep.subr.mxu0 0.0
      %1124 = vmatpush2.msra.mxu0 0.0
      %1125 = vmatprep.subr.mxu0 0.0
      %1126 = vmatpush2.msra.mxu0 0.0
      %1127 = vmatprep.subr.mxu0 0.0
      %1128 = vmatpush2.msra.mxu0 0.0
      %1129 = vmatprep.subr.mxu0 0.0
      %1130 = vmatpush2.msra.mxu0 0.0
      %1131 = vmatprep.subr.mxu0 0.0
      %1132 = vmatpush2.msra.mxu0 0.0
      %1133 = vmatprep.subr.mxu0 0.0
      %1134 = vmatpush2.msra.mxu0 0.0
      %1135 = vmatprep.subr.mxu0 0.0
      %1136 = vmatpush2.msra.mxu0 0.0
      %1137 = vmatprep.subr.mxu0 0.0
      %1138 = vmatpush2.msra.mxu0 0.0
      %1139 = vmatprep.subr.mxu0 0.0
      %1140 = vmatpush2.msra.mxu0 0.0
      %1141 = vmatprep.subr.mxu0 0.0
      %1142 = vmatpush2.msra.mxu0 0.0
      %1143 = vmatprep.subr.mxu0 0.0
      %1144 = vmatpush2.msra.mxu0 0.0
      %1145 = vmatprep.subr.mxu0 0.0
      %1146 = vmatpush2.msra.mxu0 0.0
      %1147 = vmatprep.mubr.f32.mxu0 0.0
      %1148 = vmatmul.mubr.f32.gmra.mxu0 %v1036
      %v1149 = vpop.f32.mrf.mxu0
      %v1150 = vadd.f32 %v1018, %v1149
      %v1151 = vpop.f32.mrf.mxu0
      %1152 = vmatprep.mubr.f32.mxu0 0.0
      %1153 = vmatmul.mubr.f32.gmra.mxu0 %v1039
      %v1154 = vpop.f32.mrf.mxu0
      %v1155 = vadd.f32 %v1019, %v1154
      %v1156 = vpop.f32.mrf.mxu0
      %1157 = vmatprep.mubr.f32.mxu0 0.0
      %1158 = vmatmul.mubr.f32.gmra.mxu0 %v1042
      %v1159 = vpop.f32.mrf.mxu0
      %v1160 = vadd.f32 %v1020, %v1159
      %v1161 = vpop.f32.mrf.mxu0
      %1162 = vmatprep.mubr.f32.mxu0 0.0
      %1163 = vmatmul.mubr.f32.gmra.mxu0 %v1045
      %v1164 = vpop.f32.mrf.mxu0
      %v1165 = vadd.f32 %v1021, %v1164
      %v1166 = vpop.f32.mrf.mxu0
      %1167 = vmatprep.mubr.f32.mxu0 0.0
      %1168 = vmatmul.mubr.f32.gmra.mxu0 %v1048
      %v1169 = vpop.f32.mrf.mxu0
      %v1170 = vadd.f32 %v1022, %v1169
      %v1171 = vpop.f32.mrf.mxu0
      %1172 = vmatprep.mubr.f32.mxu0 0.0
      %1173 = vmatmul.mubr.f32.gmra.mxu0 %v1051
      %v1174 = vpop.f32.mrf.mxu0
      %v1175 = vadd.f32 %v1023, %v1174
      %v1176 = vpop.f32.mrf.mxu0
      %1177 = vmatprep.mubr.f32.mxu0 0.0
      %1178 = vmatmul.mubr.f32.gmra.mxu0 %v1054
      %v1179 = vpop.f32.mrf.mxu0
      %v1180 = vadd.f32 %v1024, %v1179
      %v1181 = vpop.f32.mrf.mxu0
      %1182 = vmatprep.mubr.f32.mxu0 0.0
      %1183 = vmatmul.mubr.f32.gmra.mxu0 %v1057
      %v1184 = vpop.f32.mrf.mxu0
      %v1185 = vadd.f32 %v1025, %v1184
      %v1186 = vpop.f32.mrf.mxu0
      %1187 = vmatprep.mubr.f32.mxu0 0.0
      %1188 = vmatmul.mubr.f32.gmra.mxu0 %v1060
      %v1189 = vpop.f32.mrf.mxu0
      %v1190 = vadd.f32 %v1026, %v1189
      %v1191 = vpop.f32.mrf.mxu0
      %1192 = vmatprep.mubr.f32.mxu0 0.0
      %1193 = vmatmul.mubr.f32.gmra.mxu0 %v1063
      %v1194 = vpop.f32.mrf.mxu0
      %v1195 = vadd.f32 %v1027, %v1194
      %v1196 = vpop.f32.mrf.mxu0
      %1197 = vmatprep.mubr.f32.mxu0 0.0
      %1198 = vmatmul.mubr.f32.gmra.mxu0 %v1066
      %v1199 = vpop.f32.mrf.mxu0
      %v1200 = vadd.f32 %v1028, %v1199
      %v1201 = vpop.f32.mrf.mxu0
      %1202 = vmatprep.mubr.f32.mxu0 0.0
      %1203 = vmatmul.mubr.f32.gmra.mxu0 %v1069
      %v1204 = vpop.f32.mrf.mxu0
      %v1205 = vadd.f32 %v1029, %v1204
      %v1206 = vpop.f32.mrf.mxu0
      %1207 = vmatprep.mubr.f32.mxu0 0.0
      %1208 = vmatmul.mubr.f32.gmra.mxu0 %v1072
      %v1209 = vpop.f32.mrf.mxu0
      %v1210 = vadd.f32 %v1030, %v1209
      %v1211 = vpop.f32.mrf.mxu0
      %1212 = vmatprep.mubr.f32.mxu0 0.0
      %1213 = vmatmul.mubr.f32.gmra.mxu0 %v1075
      %v1214 = vpop.f32.mrf.mxu0
      %v1215 = vadd.f32 %v1031, %v1214
      %v1216 = vpop.f32.mrf.mxu0
      %1217 = vmatprep.mubr.f32.mxu0 0.0
      %1218 = vmatmul.mubr.f32.gmra.mxu0 %v1078
      %v1219 = vpop.f32.mrf.mxu0
      %v1220 = vadd.f32 %v1032, %v1219
      %v1221 = vpop.f32.mrf.mxu0
      %1222 = vmatprep.mubr.f32.mxu0 0.0
      %1223 = vmatmul.mubr.f32.gmra.mxu0 %v1081
      %v1224 = vpop.f32.mrf.mxu0
      %v1225 = vadd.f32 %v1033, %v1224
      %v1226 = vpop.f32.mrf.mxu0
      %1227 = vdwg.mxu0
      %v1228 = vsub.f32 0.0, %v1150
      %v1229 = vsub.f32 0.0, %v1155
      %v1230 = vsub.f32 0.0, %v1160
      %v1231 = vsub.f32 0.0, %v1165
      %v1232 = vsub.f32 0.0, %v1170
      %v1233 = vsub.f32 0.0, %v1175
      %v1234 = vsub.f32 0.0, %v1180
      %v1235 = vsub.f32 0.0, %v1185
      %v1236 = vsub.f32 0.0, %v1190
      %v1237 = vsub.f32 0.0, %v1195
      %v1238 = vsub.f32 0.0, %v1200
      %v1239 = vsub.f32 0.0, %v1205
      %v1240 = vsub.f32 0.0, %v1210
      %v1241 = vsub.f32 0.0, %v1215
      %v1242 = vsub.f32 0.0, %v1220
      %v1243 = vsub.f32 0.0, %v1225
      %v1244 = vmul.f32 %v1228, 1.442695
      %v1245 = vpow.pop %v1244
      %v1246 = vmul.f32 %v1229, 1.442695
      %v1247 = vpow.pop %v1246
      %v1248 = vmul.f32 %v1230, 1.442695
      %v1249 = vpow.pop %v1248
      %v1250 = vmul.f32 %v1231, 1.442695
      %v1251 = vpow.pop %v1250
      %v1252 = vmul.f32 %v1232, 1.442695
      %v1253 = vpow.pop %v1252
      %v1254 = vmul.f32 %v1233, 1.442695
      %v1255 = vpow.pop %v1254
      %v1256 = vmul.f32 %v1234, 1.442695
      %v1257 = vpow.pop %v1256
      %v1258 = vmul.f32 %v1235, 1.442695
      %v1259 = vpow.pop %v1258
      %v1260 = vmul.f32 %v1236, 1.442695
      %v1261 = vpow.pop %v1260
      %v1262 = vmul.f32 %v1237, 1.442695
      %v1263 = vpow.pop %v1262
      %v1264 = vmul.f32 %v1238, 1.442695
      %v1265 = vpow.pop %v1264
      %v1266 = vmul.f32 %v1239, 1.442695
      %v1267 = vpow.pop %v1266
      %v1268 = vmul.f32 %v1240, 1.442695
      %v1269 = vpow.pop %v1268
      %v1270 = vmul.f32 %v1241, 1.442695
      %v1271 = vpow.pop %v1270
      %v1272 = vmul.f32 %v1242, 1.442695
      %v1273 = vpow.pop %v1272
      %v1274 = vmul.f32 %v1243, 1.442695
      %v1275 = vpow.pop %v1274
      %v1276 = vadd.f32 %v1245, 1.0
      %v1277 = vadd.f32 %v1247, 1.0
      %v1278 = vadd.f32 %v1249, 1.0
      %v1279 = vadd.f32 %v1251, 1.0
      %v1280 = vadd.f32 %v1253, 1.0
      %v1281 = vadd.f32 %v1255, 1.0
      %v1282 = vadd.f32 %v1257, 1.0
      %v1283 = vadd.f32 %v1259, 1.0
      %v1284 = vadd.f32 %v1261, 1.0
      %v1285 = vadd.f32 %v1263, 1.0
      %v1286 = vadd.f32 %v1265, 1.0
      %v1287 = vadd.f32 %v1267, 1.0
      %v1288 = vadd.f32 %v1269, 1.0
      %v1289 = vadd.f32 %v1271, 1.0
      %v1290 = vadd.f32 %v1273, 1.0
      %v1291 = vadd.f32 %v1275, 1.0
      %v1292 = vrcp.pop %v1276
      %v1293 = vmul.f32 1.0, %v1292
      %v1294 = vrcp.pop %v1277
      %v1295 = vmul.f32 1.0, %v1294
      %v1296 = vrcp.pop %v1278
      %v1297 = vmul.f32 1.0, %v1296
      %v1298 = vrcp.pop %v1279
      %v1299 = vmul.f32 1.0, %v1298
      %v1300 = vrcp.pop %v1280
      %v1301 = vmul.f32 1.0, %v1300
      %v1302 = vrcp.pop %v1281
      %v1303 = vmul.f32 1.0, %v1302
      %v1304 = vrcp.pop %v1282
      %v1305 = vmul.f32 1.0, %v1304
      %v1306 = vrcp.pop %v1283
      %v1307 = vmul.f32 1.0, %v1306
      %v1308 = vrcp.pop %v1284
      %v1309 = vmul.f32 1.0, %v1308
      %v1310 = vrcp.pop %v1285
      %v1311 = vmul.f32 1.0, %v1310
      %v1312 = vrcp.pop %v1286
      %v1313 = vmul.f32 1.0, %v1312
      %v1314 = vrcp.pop %v1287
      %v1315 = vmul.f32 1.0, %v1314
      %v1316 = vrcp.pop %v1288
      %v1317 = vmul.f32 1.0, %v1316
      %v1318 = vrcp.pop %v1289
      %v1319 = vmul.f32 1.0, %v1318
      %v1320 = vrcp.pop %v1290
      %v1321 = vmul.f32 1.0, %v1320
      %v1322 = vrcp.pop %v1291
      %v1323 = vmul.f32 1.0, %v1322
      %1325 = vset.pattern.permute.xlu0 0
      %1326 = vperm.xlu0 %1325, %v1293
      %v1327 = vpop.permute.xlu0 %1326
      %1330 = vset.pattern.permute.xlu0 0
      %1331 = vperm.xlu0 %1330, %v1295
      %v1332 = vpop.permute.xlu0 %1331
      %1335 = vset.pattern.permute.xlu0 0
      %1336 = vperm.xlu0 %1335, %v1297
      %v1337 = vpop.permute.xlu0 %1336
      %1340 = vset.pattern.permute.xlu0 0
      %1341 = vperm.xlu0 %1340, %v1299
      %v1342 = vpop.permute.xlu0 %1341
      %1345 = vset.pattern.permute.xlu0 0
      %1346 = vperm.xlu0 %1345, %v1301
      %v1347 = vpop.permute.xlu0 %1346
      %1350 = vset.pattern.permute.xlu0 0
      %1351 = vperm.xlu0 %1350, %v1303
      %v1352 = vpop.permute.xlu0 %1351
      %1355 = vset.pattern.permute.xlu0 0
      %1356 = vperm.xlu0 %1355, %v1305
      %v1357 = vpop.permute.xlu0 %1356
      %1360 = vset.pattern.permute.xlu0 0
      %1361 = vperm.xlu0 %1360, %v1307
      %v1362 = vpop.permute.xlu0 %1361
      %1365 = vset.pattern.permute.xlu0 0
      %1366 = vperm.xlu0 %1365, %v1309
      %v1367 = vpop.permute.xlu0 %1366
      %1370 = vset.pattern.permute.xlu0 0
      %1371 = vperm.xlu0 %1370, %v1311
      %v1372 = vpop.permute.xlu0 %1371
      %1375 = vset.pattern.permute.xlu0 0
      %1376 = vperm.xlu0 %1375, %v1313
      %v1377 = vpop.permute.xlu0 %1376
      %1380 = vset.pattern.permute.xlu0 0
      %1381 = vperm.xlu0 %1380, %v1315
      %v1382 = vpop.permute.xlu0 %1381
      %1385 = vset.pattern.permute.xlu0 0
      %1386 = vperm.xlu0 %1385, %v1317
      %v1387 = vpop.permute.xlu0 %1386
      %1390 = vset.pattern.permute.xlu0 0
      %1391 = vperm.xlu0 %1390, %v1319
      %v1392 = vpop.permute.xlu0 %1391
      %1395 = vset.pattern.permute.xlu0 0
      %1396 = vperm.xlu0 %1395, %v1321
      %v1397 = vpop.permute.xlu0 %1396
      %1400 = vset.pattern.permute.xlu0 0
      %1401 = vperm.xlu0 %1400, %v1323
      %v1402 = vpop.permute.xlu0 %1401
      %v1404 = vmul.f32 %v1327, %v762
      %v1405 = vmul.f32 %v1327, %v764
      %v1406 = vmul.f32 %v1332, %v768
      %v1407 = vmul.f32 %v1332, %v770
      %v1408 = vmul.f32 %v1337, %v774
      %v1409 = vmul.f32 %v1337, %v776
      %v1410 = vmul.f32 %v1342, %v780
      %v1411 = vmul.f32 %v1342, %v782
      %v1412 = vmul.f32 %v1347, %v786
      %v1413 = vmul.f32 %v1347, %v788
      %v1414 = vmul.f32 %v1352, %v792
      %v1415 = vmul.f32 %v1352, %v794
      %v1416 = vmul.f32 %v1357, %v798
      %v1417 = vmul.f32 %v1357, %v800
      %v1418 = vmul.f32 %v1362, %v804
      %v1419 = vmul.f32 %v1362, %v806
      %v1420 = vmul.f32 %v1367, %v810
      %v1421 = vmul.f32 %v1367, %v812
      %v1422 = vmul.f32 %v1372, %v816
      %v1423 = vmul.f32 %v1372, %v818
      %v1424 = vmul.f32 %v1377, %v822
      %v1425 = vmul.f32 %v1377, %v824
      %v1426 = vmul.f32 %v1382, %v828
      %v1427 = vmul.f32 %v1382, %v830
      %v1428 = vmul.f32 %v1387, %v834
      %v1429 = vmul.f32 %v1387, %v836
      %v1430 = vmul.f32 %v1392, %v840
      %v1431 = vmul.f32 %v1392, %v842
      %v1432 = vmul.f32 %v1397, %v846
      %v1433 = vmul.f32 %v1397, %v848
      %v1434 = vmul.f32 %v1402, %v852
      %v1435 = vmul.f32 %v1402, %v854
      %v1436 = vadd.f32 %v1404, %v1406
      %v1437 = vadd.f32 %v1436, %v1408
      %v1438 = vadd.f32 %v1437, %v1410
      %v1439 = vadd.f32 %v1438, %v1412
      %v1440 = vadd.f32 %v1439, %v1414
      %v1441 = vadd.f32 %v1440, %v1416
      %v1442 = vadd.f32 %v1441, %v1418
      %v1443 = vadd.f32 %v1442, %v1420
      %v1444 = vadd.f32 %v1443, %v1422
      %v1445 = vadd.f32 %v1444, %v1424
      %v1446 = vadd.f32 %v1445, %v1426
      %v1447 = vadd.f32 %v1446, %v1428
      %v1448 = vadd.f32 %v1447, %v1430
      %v1449 = vadd.f32 %v1448, %v1432
      %v1450 = vadd.f32 %v1449, %v1434
      %v1451 = vrot.slane %v1450, 4
      %v1452 = vadd.f32 %v1450, %v1451
      %v1453 = vrot.slane %v1452, 2
      %v1454 = vadd.f32 %v1452, %v1453
      %v1455 = vrot.slane %v1454, 1
      %v1456 = vadd.f32 %v1454, %v1455
      %v1457 = vadd.f32 %v1405, %v1407
      %v1458 = vadd.f32 %v1457, %v1409
      %v1459 = vadd.f32 %v1458, %v1411
      %v1460 = vadd.f32 %v1459, %v1413
      %v1461 = vadd.f32 %v1460, %v1415
      %v1462 = vadd.f32 %v1461, %v1417
      %v1463 = vadd.f32 %v1462, %v1419
      %v1464 = vadd.f32 %v1463, %v1421
      %v1465 = vadd.f32 %v1464, %v1423
      %v1466 = vadd.f32 %v1465, %v1425
      %v1467 = vadd.f32 %v1466, %v1427
      %v1468 = vadd.f32 %v1467, %v1429
      %v1469 = vadd.f32 %v1468, %v1431
      %v1470 = vadd.f32 %v1469, %v1433
      %v1471 = vadd.f32 %v1470, %v1435
      %v1472 = vrot.slane %v1471, 4
      %v1473 = vadd.f32 %v1471, %v1472
      %v1474 = vrot.slane %v1473, 2
      %v1475 = vadd.f32 %v1473, %v1474
      %v1476 = vrot.slane %v1475, 1
      %v1477 = vadd.f32 %v1475, %v1476
      %v1478 = vrcp.pop 128.0
      %v1479 = vmul.f32 %v1456, %v1478
      %v1480 = vmul.f32 %v1477, %v1478
      %v1481 = vmax.f32 %v1404, %v1408
      %v1482 = vmax.f32 %v1406, %v1410
      %v1483 = vmax.f32 %v1481, %v1412
      %v1484 = vmax.f32 %v1482, %v1414
      %v1485 = vmax.f32 %v1483, %v1416
      %v1486 = vmax.f32 %v1484, %v1418
      %v1487 = vmax.f32 %v1485, %v1420
      %v1488 = vmax.f32 %v1486, %v1422
      %v1489 = vmax.f32 %v1487, %v1424
      %v1490 = vmax.f32 %v1488, %v1426
      %v1491 = vmax.f32 %v1489, %v1428
      %v1492 = vmax.f32 %v1490, %v1430
      %v1493 = vmax.f32 %v1491, %v1432
      %v1494 = vmax.f32 %v1492, %v1434
      %v1495 = vmax.f32 %v1493, %v1494
      %v1496 = vrot.slane %v1495, 4
      %v1497 = vmax.f32 %v1495, %v1496
      %v1498 = vrot.slane %v1497, 2
      %v1499 = vmax.f32 %v1497, %v1498
      %v1500 = vrot.slane %v1499, 1
      %v1501 = vmax.f32 %v1499, %v1500
      %v1502 = vmax.f32 %v1405, %v1409
      %v1503 = vmax.f32 %v1407, %v1411
      %v1504 = vmax.f32 %v1502, %v1413
      %v1505 = vmax.f32 %v1503, %v1415
      %v1506 = vmax.f32 %v1504, %v1417
      %v1507 = vmax.f32 %v1505, %v1419
      %v1508 = vmax.f32 %v1506, %v1421
      %v1509 = vmax.f32 %v1507, %v1423
      %v1510 = vmax.f32 %v1508, %v1425
      %v1511 = vmax.f32 %v1509, %v1427
      %v1512 = vmax.f32 %v1510, %v1429
      %v1513 = vmax.f32 %v1511, %v1431
      %v1514 = vmax.f32 %v1512, %v1433
      %v1515 = vmax.f32 %v1513, %v1435
      %v1516 = vmax.f32 %v1514, %v1515
      %v1517 = vrot.slane %v1516, 4
      %v1518 = vmax.f32 %v1516, %v1517
      %v1519 = vrot.slane %v1518, 2
      %v1520 = vmax.f32 %v1518, %v1519
      %v1521 = vrot.slane %v1520, 1
      %v1522 = vmax.f32 %v1520, %v1521
      %1523 = vst [vmem:[%s347] sm:$0xff] %v601
      %1524 = vst [vmem:[%s347 + $0x8] sm:$0xff] %v603
      %1525 = vst [vmem:[%s347 + $0x10] sm:$0xff] %v607
      %1526 = vst [vmem:[%s347 + $0x18] sm:$0xff] %v609
      %1527 = vst [vmem:[%s347 + $0x20] sm:$0xff] %v613
      %1528 = vst [vmem:[%s347 + $0x28] sm:$0xff] %v615
      %1529 = vst [vmem:[%s347 + $0x30] sm:$0xff] %v619
      %1530 = vst [vmem:[%s347 + $0x38] sm:$0xff] %v621
      %1531 = vst [vmem:[%s347 + $0x40] sm:$0xff] %v625
      %1532 = vst [vmem:[%s347 + $0x48] sm:$0xff] %v627
      %1533 = vst [vmem:[%s347 + $0x50] sm:$0xff] %v631
      %1534 = vst [vmem:[%s347 + $0x58] sm:$0xff] %v633
      %1535 = vst [vmem:[%s347 + $0x60] sm:$0xff] %v637
      %1536 = vst [vmem:[%s347 + $0x68] sm:$0xff] %v639
      %1537 = vst [vmem:[%s347 + $0x70] sm:$0xff] %v643
      %1538 = vst [vmem:[%s347 + $0x78] sm:$0xff] %v645
      %1539 = vst [vmem:[%s347 + $0x80] sm:$0xff] %v649
      %1540 = vst [vmem:[%s347 + $0x88] sm:$0xff] %v651
      %1541 = vst [vmem:[%s347 + $0x90] sm:$0xff] %v655
      %1542 = vst [vmem:[%s347 + $0x98] sm:$0xff] %v657
      %1543 = vst [vmem:[%s347 + $0xa0] sm:$0xff] %v661
      %1544 = vst [vmem:[%s347 + $0xa8] sm:$0xff] %v663
      %1545 = vst [vmem:[%s347 + $0xb0] sm:$0xff] %v667
      %1546 = vst [vmem:[%s347 + $0xb8] sm:$0xff] %v669
      %1547 = vst [vmem:[%s347 + $0xc0] sm:$0xff] %v673
      %1548 = vst [vmem:[%s347 + $0xc8] sm:$0xff] %v675
      %1549 = vst [vmem:[%s347 + $0xd0] sm:$0xff] %v679
      %1550 = vst [vmem:[%s347 + $0xd8] sm:$0xff] %v681
      %1551 = vst [vmem:[%s347 + $0xe0] sm:$0xff] %v685
      %1552 = vst [vmem:[%s347 + $0xe8] sm:$0xff] %v687
      %1553 = vst [vmem:[%s347 + $0xf0] sm:$0xff] %v691
      %1554 = vst [vmem:[%s347 + $0xf8] sm:$0xff] %v693
      %1555 = vst [vmem:[%s352] sm:$0xff] %v1404
      %1556 = vst [vmem:[%s352 + $0x8] sm:$0xff] %v1405
      %1557 = vst [vmem:[%s352 + $0x10] sm:$0xff] %v1406
      %1558 = vst [vmem:[%s352 + $0x18] sm:$0xff] %v1407
      %1559 = vst [vmem:[%s352 + $0x20] sm:$0xff] %v1408
      %1560 = vst [vmem:[%s352 + $0x28] sm:$0xff] %v1409
      %1561 = vst [vmem:[%s352 + $0x30] sm:$0xff] %v1410
      %1562 = vst [vmem:[%s352 + $0x38] sm:$0xff] %v1411
      %1563 = vst [vmem:[%s352 + $0x40] sm:$0xff] %v1412
      %1564 = vst [vmem:[%s352 + $0x48] sm:$0xff] %v1413
      %1565 = vst [vmem:[%s352 + $0x50] sm:$0xff] %v1414
      %1566 = vst [vmem:[%s352 + $0x58] sm:$0xff] %v1415
      %1567 = vst [vmem:[%s352 + $0x60] sm:$0xff] %v1416
      %1568 = vst [vmem:[%s352 + $0x68] sm:$0xff] %v1417
      %1569 = vst [vmem:[%s352 + $0x70] sm:$0xff] %v1418
      %1570 = vst [vmem:[%s352 + $0x78] sm:$0xff] %v1419
      %1571 = vst [vmem:[%s352 + $0x80] sm:$0xff] %v1420
      %1572 = vst [vmem:[%s352 + $0x88] sm:$0xff] %v1421
      %1573 = vst [vmem:[%s352 + $0x90] sm:$0xff] %v1422
      %1574 = vst [vmem:[%s352 + $0x98] sm:$0xff] %v1423
      %1575 = vst [vmem:[%s352 + $0xa0] sm:$0xff] %v1424
      %1576 = vst [vmem:[%s352 + $0xa8] sm:$0xff] %v1425
      %1577 = vst [vmem:[%s352 + $0xb0] sm:$0xff] %v1426
      %1578 = vst [vmem:[%s352 + $0xb8] sm:$0xff] %v1427
      %1579 = vst [vmem:[%s352 + $0xc0] sm:$0xff] %v1428
      %1580 = vst [vmem:[%s352 + $0xc8] sm:$0xff] %v1429
      %1581 = vst [vmem:[%s352 + $0xd0] sm:$0xff] %v1430
      %1582 = vst [vmem:[%s352 + $0xd8] sm:$0xff] %v1431
      %1583 = vst [vmem:[%s352 + $0xe0] sm:$0xff] %v1432
      %1584 = vst [vmem:[%s352 + $0xe8] sm:$0xff] %v1433
      %1585 = vst [vmem:[%s352 + $0xf0] sm:$0xff] %v1434
      %1586 = vst [vmem:[%s352 + $0xf8] sm:$0xff] %v1435
      %v1589 = vcombine.low %v1479, %v1480
      %v1591 = vunpack.c.l.s4 1966171168
      %v1592 = vunpack.c.0.s8 %v1591
      %v1593 = vlaneseq
      %v1594 = vshrl.u32 %v1593, 7
      %v1595 = vsub.s32 %v1592, %v1594
      %v1596 = vrot.slane %v1589, %v1595
      %v1598 = vunpack.c.l.s4 1966171168
      %v1599 = vunpack.c.0.s8 %v1598
      %v1600 = vlaneseq
      %v1601 = vshrl.u32 %v1600, 7
      %v1602 = vsub.s32 %v1599, %v1601
      %v1603 = vrot.slane %v1596, %v1602
      %v1605 = vlaneseq
      %vm1606 = vcmp.ge.s32.totalorder %v1605, 0
      %vm1607 = vcmp.lt.s32.totalorder %v1605, 256
      %vm1608 = vmand %vm1606, %vm1607
      %1609 = vst.msk [vmem:[%s357] ss:$2 sm:$0x3] %vm1608, %v1603
      %v1612 = vcombine.low %v1501, %v1522
      %v1614 = vunpack.c.l.s4 1966171168
      %v1615 = vunpack.c.0.s8 %v1614
      %v1616 = vlaneseq
      %v1617 = vshrl.u32 %v1616, 7
      %v1618 = vsub.s32 %v1615, %v1617
      %v1619 = vrot.slane %v1612, %v1618
      %v1621 = vunpack.c.l.s4 1966171168
      %v1622 = vunpack.c.0.s8 %v1621
      %v1623 = vlaneseq
      %v1624 = vshrl.u32 %v1623, 7
      %v1625 = vsub.s32 %v1622, %v1624
      %v1626 = vrot.slane %v1619, %v1625
      %s1628 = scalar_lea.vmem %s357, 1
      %1629 = vst.msk [vmem:[%s1628] ss:$2 sm:$0x3] %vm1608, %v1626
      %p1630 = scmp.lt.s32.totalorder %s21, 1
      %s1631 = scalar_select %p1630, %s21, 1
      %s1632 = smul.addr %s1631, 32
      %s1633 = smul.addr %s1632, 8
      %s1634 = scalar_lea.vmem %s7, %s1633
      %p1635 = scmp.lt.s32.totalorder %s21, 1
      %s1636 = scalar_select %p1635, %s21, 1
      %s1637 = smul.addr %s1636, 32
      %s1638 = smul.addr %s1637, 8
      %s1639 = scalar_lea.vmem %s8, %s1638
      %p1640 = scmp.lt.s32.totalorder %s21, 1
      %s1641 = scalar_select %p1640, %s21, 1
      %s1642 = smul.addr %s1641, 2
      %s1643 = smul.addr %s1642, 2
      %s1644 = scalar_lea.vmem %s9, %s1643
      // Predicated region
      $region49: #{edge_information_injector_forward.2} parent=47 // pred_check
        %p1645 = pneg %p191
      $region50: #{edge_information_injector_forward.2} parent=47 // pred_check_branch
        %1647 = sbr.rel (%p1645) target = $region52
      $region51: #{edge_information_injector_forward.2} parent=47 // pred_region
        _
      $region52: #{edge_information_injector_forward.2} parent=47 // pred_fallthru
        _
      // Predicated region
      $region53: #{edge_information_injector_forward.2} parent=47 // pred_check
        %p1648 = pneg %p217
      $region54: #{edge_information_injector_forward.2} parent=47 // pred_check_branch
        %1650 = sbr.rel (%p1648) target = $region56
      $region55: #{edge_information_injector_forward.2} parent=47 // pred_region
        _
      $region56: #{edge_information_injector_forward.2} parent=47 // pred_fallthru
        _
      // Predicated region
      $region57: #{edge_information_injector_forward.2} parent=47 // pred_check
        %p1651 = pneg %p243
      $region58: #{edge_information_injector_forward.2} parent=47 // pred_check_branch
        %1653 = sbr.rel (%p1651) target = $region60
      $region59: #{edge_information_injector_forward.2} parent=47 // pred_region
        _
      $region60: #{edge_information_injector_forward.2} parent=47 // pred_fallthru
        _
    $region48: #{edge_information_injector_forward.2} parent=5 // pred_fallthru
      _
    %p1654 = scmp.le.s32.totalorder 2, %s16
    // Predicated region
    $region61: #{edge_information_injector_forward.2} parent=5 // pred_check
      %p1655 = pneg %p1654
    $region62: #{edge_information_injector_forward.2} parent=5 // pred_check_branch
      %1657 = sbr.rel (%p1655) target = $region64
    $region63: #{edge_information_injector_forward.2} parent=5 // pred_region
      %s1658 = ssub.s32 %s16, 2
      // Predicated region
      $region65: #{edge_information_injector_forward.2} parent=63 // pred_check
        %p1659 = pneg %p197
      $region66: #{edge_information_injector_forward.2} parent=63 // pred_check_branch
        %1661 = sbr.rel (%p1659) target = $region68
      $region67: #{edge_information_injector_forward.2} parent=63 // pred_region
        %p1662 = scmp.lt.s32.totalorder %s22, 1
        %s1663 = scalar_select %p1662, %s22, 1
        %s1664 = smul.addr %s1663, 32
        %s1665 = smul.addr %s1664, 8
        %s1666 = scalar_lea.vmem %s7, %s1665
      $region68: #{edge_information_injector_forward.2} parent=63 // pred_fallthru
        _
      // Predicated region
      $region69: #{edge_information_injector_forward.2} parent=63 // pred_check
        %p1667 = pneg %p223
      $region70: #{edge_information_injector_forward.2} parent=63 // pred_check_branch
        %1669 = sbr.rel (%p1667) target = $region72
      $region71: #{edge_information_injector_forward.2} parent=63 // pred_region
        %p1670 = scmp.lt.s32.totalorder %s22, 1
        %s1671 = scalar_select %p1670, %s22, 1
        %s1672 = smul.addr %s1671, 32
        %s1673 = smul.addr %s1672, 8
        %s1674 = scalar_lea.vmem %s8, %s1673
      $region72: #{edge_information_injector_forward.2} parent=63 // pred_fallthru
        _
      // Predicated region
      $region73: #{edge_information_injector_forward.2} parent=63 // pred_check
        %p1675 = pneg %p249
      $region74: #{edge_information_injector_forward.2} parent=63 // pred_check_branch
        %1677 = sbr.rel (%p1675) target = $region76
      $region75: #{edge_information_injector_forward.2} parent=63 // pred_region
        %p1678 = scmp.lt.s32.totalorder %s22, 1
        %s1679 = scalar_select %p1678, %s22, 1
        %s1680 = smul.addr %s1679, 2
        %s1681 = smul.addr %s1680, 2
        %s1682 = scalar_lea.vmem %s9, %s1681
      $region76: #{edge_information_injector_forward.2} parent=63 // pred_fallthru
        _
    $region64: #{edge_information_injector_forward.2} parent=5 // pred_fallthru
      _
  $region6: #{edge_information_injector_forward.2} parent=0 // loop_footer
    %s20 = sadd.s32 1, %s16
  $region7: #{edge_information_injector_forward.2} parent=0 // loop_footer_branch
    %15 = sbr.rel target = $region3
  $region8: #{edge_information_injector_forward.2} parent=0 // loop_exit
    _

// kernel: edge_information_injector_forward.3
$region0: #{edge_information_injector_forward.3}
  #allocation0 [shape = 'u32[]', space=smem, size = 0x4, offset = 0x4, fixed_abs, tag = 'smem constant byte address 0x4 - core index']
  #allocation1 [shape = 'u32[144,128]{1,0:T(1,128)}', space=vmem, size = 0x12000, scoped, tag = 'internal scratch']
  %s0 = inlined_call_operand.vmem [shape: f32[2,98,256], index: 0, kind: input, shape index: {}]
  %s1 = inlined_call_operand.vmem [shape: f32[98,1], index: 1, kind: input, shape index: {}]
  %s2 = inlined_call_operand.vmem [shape: f32[2,128,256], index: 2, kind: input, shape index: {}]
  %s3 = inlined_call_operand.vmem [shape: f32[2,128,256], index: 3, kind: input, shape index: {}]
  %s4 = inlined_call_operand.vmem [shape: f32[128,128], index: 4, kind: input, shape index: {}]
  %s5 = inlined_call_operand.vmem [shape: f32[128,128], index: 5, kind: input, shape index: {}]
  %s6 = inlined_call_operand.vmem [shape: f32[128,1], index: 6, kind: input, shape index: {}]
  %s7 = inlined_call_operand.vmem [shape: f32[2,128,256], index: 7, kind: output, shape index: {}]
  %s8 = sld [smem:[#allocation0]]
  $region61: #{edge_information_injector_forward.3} parent=0
    _
  %s10 = ssub.s32 1, %s8
  %s11 = scalar_select 0, %s10, %s8
  loop: start=0, step=1, limit=4
  $region2: #{edge_information_injector_forward.3} parent=0 // loop_pre_header
    _
  $region3: #{edge_information_injector_forward.3} parent=0 // loop_header
    %s13 = sphi 0, %s17
    %p14 = scmp.ge.s32.totalorder %s13, 4
    %s23 = sphi 0, %s25
    %s26 = sphi 0, %s23
    %s27 = sphi 0, %s26
    %s43 = sphi 0, %s27
    %s47 = sphi 0, %s47
    %s49 = sphi 0, %s47
    %s50 = sphi 0, %s49
    %s64 = sphi 0, %s50
    %s70 = sphi 0, %s72
    %s73 = sphi 0, %s70
    %s74 = sphi 0, %s73
    %s90 = sphi 0, %s74
    %s96 = sphi 0, %s98
    %s99 = sphi 0, %s96
    %s100 = sphi 0, %s99
    %s116 = sphi 0, %s100
    %s120 = sphi 0, %s120
    %s122 = sphi 0, %s120
    %s123 = sphi 0, %s122
    %s137 = sphi 0, %s123
    %s141 = sphi 0, %s141
    %s143 = sphi 0, %s141
    %s144 = sphi 0, %s143
    %s158 = sphi 0, %s144
    %s162 = sphi 0, %s162
    %s164 = sphi 0, %s162
    %s165 = sphi 0, %s164
    %s179 = sphi 0, %s165
    %s185 = sphi 0, %s187
    %s188 = sphi 0, %s185
    %s189 = sphi 0, %s188
    %s205 = sphi 0, %s189
  $region4: #{edge_information_injector_forward.3} parent=0 // loop_header_branch
    %16 = sbr.rel (%p14) target = $region8
  $region5: #{edge_information_injector_forward.3} parent=0 // loop_body
    %s18 = ssub.s32 %s13, 1
    %s19 = ssub.s32 %s13, 2
    %s20 = sadd.s32 %s13, 1
    %s21 = ssub.s32 %s13, %s20
    %p22 = scmp.eq.s32.totalorder %s21, 0
    %s24 = sadd.s32 %s23, 1
    %s25 = scalar_select %p22, %s23, %s24
    %p28 = pneg %p22
    %p29 = scmp.eq.s32.totalorder %s13, 1
    %p30 = por %p28, %p29
    %p31 = scmp.ne.s32.totalorder %s23, %s26
    %p32 = scmp.eq.s32.totalorder %s13, 0
    %p33 = por %p31, %p32
    %p34 = scmp.ne.s32.totalorder %s23, %s26
    %p35 = scmp.eq.s32.totalorder %s18, 1
    %p36 = por %p34, %p35
    %p37 = scmp.ne.s32.totalorder %s26, %s27
    %p38 = scmp.eq.s32.totalorder %s18, 0
    %p39 = por %p37, %p38
    %p40 = scmp.ne.s32.totalorder %s26, %s27
    %p41 = scmp.eq.s32.totalorder %s19, 1
    %p42 = por %p40, %p41
    %p44 = scmp.ne.s32.totalorder %s27, %s43
    %p45 = scmp.eq.s32.totalorder %s19, 0
    %p46 = por %p44, %p45
    %s48 = sadd.s32 %s47, 1
    %p51 = scmp.eq.s32.totalorder %s13, 1
    %p52 = scmp.ne.s32.totalorder %s47, %s49
    %p53 = scmp.eq.s32.totalorder %s13, 0
    %p54 = por %p52, %p53
    %p55 = scmp.ne.s32.totalorder %s47, %s49
    %p56 = scmp.eq.s32.totalorder %s18, 1
    %p57 = por %p55, %p56
    %p58 = scmp.ne.s32.totalorder %s49, %s50
    %p59 = scmp.eq.s32.totalorder %s18, 0
    %p60 = por %p58, %p59
    %p61 = scmp.ne.s32.totalorder %s49, %s50
    %p62 = scmp.eq.s32.totalorder %s19, 1
    %p63 = por %p61, %p62
    %p65 = scmp.ne.s32.totalorder %s50, %s64
    %p66 = scmp.eq.s32.totalorder %s19, 0
    %p67 = por %p65, %p66
    %s68 = ssub.s32 %s13, %s20
    %p69 = scmp.eq.s32.totalorder %s68, 0
    %s71 = sadd.s32 %s70, 1
    %s72 = scalar_select %p69, %s70, %s71
    %p75 = pneg %p69
    %p76 = scmp.eq.s32.totalorder %s13, 1
    %p77 = por %p75, %p76
    %p78 = scmp.ne.s32.totalorder %s70, %s73
    %p79 = scmp.eq.s32.totalorder %s13, 0
    %p80 = por %p78, %p79
    %p81 = scmp.ne.s32.totalorder %s70, %s73
    %p82 = scmp.eq.s32.totalorder %s18, 1
    %p83 = por %p81, %p82
    %p84 = scmp.ne.s32.totalorder %s73, %s74
    %p85 = scmp.eq.s32.totalorder %s18, 0
    %p86 = por %p84, %p85
    %p87 = scmp.ne.s32.totalorder %s73, %s74
    %p88 = scmp.eq.s32.totalorder %s19, 1
    %p89 = por %p87, %p88
    %p91 = scmp.ne.s32.totalorder %s74, %s90
    %p92 = scmp.eq.s32.totalorder %s19, 0
    %p93 = por %p91, %p92
    %s94 = ssub.s32 %s13, %s20
    %p95 = scmp.eq.s32.totalorder %s94, 0
    %s97 = sadd.s32 %s96, 1
    %s98 = scalar_select %p95, %s96, %s97
    %p101 = pneg %p95
    %p102 = scmp.eq.s32.totalorder %s13, 1
    %p103 = por %p101, %p102
    %p104 = scmp.ne.s32.totalorder %s96, %s99
    %p105 = scmp.eq.s32.totalorder %s13, 0
    %p106 = por %p104, %p105
    %p107 = scmp.ne.s32.totalorder %s96, %s99
    %p108 = scmp.eq.s32.totalorder %s18, 1
    %p109 = por %p107, %p108
    %p110 = scmp.ne.s32.totalorder %s99, %s100
    %p111 = scmp.eq.s32.totalorder %s18, 0
    %p112 = por %p110, %p111
    %p113 = scmp.ne.s32.totalorder %s99, %s100
    %p114 = scmp.eq.s32.totalorder %s19, 1
    %p115 = por %p113, %p114
    %p117 = scmp.ne.s32.totalorder %s100, %s116
    %p118 = scmp.eq.s32.totalorder %s19, 0
    %p119 = por %p117, %p118
    %s121 = sadd.s32 %s120, 1
    %p124 = scmp.eq.s32.totalorder %s13, 1
    %p125 = scmp.ne.s32.totalorder %s120, %s122
    %p126 = scmp.eq.s32.totalorder %s13, 0
    %p127 = por %p125, %p126
    %p128 = scmp.ne.s32.totalorder %s120, %s122
    %p129 = scmp.eq.s32.totalorder %s18, 1
    %p130 = por %p128, %p129
    %p131 = scmp.ne.s32.totalorder %s122, %s123
    %p132 = scmp.eq.s32.totalorder %s18, 0
    %p133 = por %p131, %p132
    %p134 = scmp.ne.s32.totalorder %s122, %s123
    %p135 = scmp.eq.s32.totalorder %s19, 1
    %p136 = por %p134, %p135
    %p138 = scmp.ne.s32.totalorder %s123, %s137
    %p139 = scmp.eq.s32.totalorder %s19, 0
    %p140 = por %p138, %p139
    %s142 = sadd.s32 %s141, 1
    %p145 = scmp.eq.s32.totalorder %s13, 1
    %p146 = scmp.ne.s32.totalorder %s141, %s143
    %p147 = scmp.eq.s32.totalorder %s13, 0
    %p148 = por %p146, %p147
    %p149 = scmp.ne.s32.totalorder %s141, %s143
    %p150 = scmp.eq.s32.totalorder %s18, 1
    %p151 = por %p149, %p150
    %p152 = scmp.ne.s32.totalorder %s143, %s144
    %p153 = scmp.eq.s32.totalorder %s18, 0
    %p154 = por %p152, %p153
    %p155 = scmp.ne.s32.totalorder %s143, %s144
    %p156 = scmp.eq.s32.totalorder %s19, 1
    %p157 = por %p155, %p156
    %p159 = scmp.ne.s32.totalorder %s144, %s158
    %p160 = scmp.eq.s32.totalorder %s19, 0
    %p161 = por %p159, %p160
    %s163 = sadd.s32 %s162, 1
    %p166 = scmp.eq.s32.totalorder %s13, 1
    %p167 = scmp.ne.s32.totalorder %s162, %s164
    %p168 = scmp.eq.s32.totalorder %s13, 0
    %p169 = por %p167, %p168
    %p170 = scmp.ne.s32.totalorder %s162, %s164
    %p171 = scmp.eq.s32.totalorder %s18, 1
    %p172 = por %p170, %p171
    %p173 = scmp.ne.s32.totalorder %s164, %s165
    %p174 = scmp.eq.s32.totalorder %s18, 0
    %p175 = por %p173, %p174
    %p176 = scmp.ne.s32.totalorder %s164, %s165
    %p177 = scmp.eq.s32.totalorder %s19, 1
    %p178 = por %p176, %p177
    %p180 = scmp.ne.s32.totalorder %s165, %s179
    %p181 = scmp.eq.s32.totalorder %s19, 0
    %p182 = por %p180, %p181
    %s183 = ssub.s32 %s13, %s20
    %p184 = scmp.eq.s32.totalorder %s183, 0
    %s186 = sadd.s32 %s185, 1
    %s187 = scalar_select %p184, %s185, %s186
    %p190 = pneg %p184
    %p191 = scmp.eq.s32.totalorder %s13, 1
    %p192 = por %p190, %p191
    %p193 = scmp.ne.s32.totalorder %s185, %s188
    %p194 = scmp.eq.s32.totalorder %s13, 0
    %p195 = por %p193, %p194
    %p196 = scmp.ne.s32.totalorder %s185, %s188
    %p197 = scmp.eq.s32.totalorder %s18, 1
    %p198 = por %p196, %p197
    %p199 = scmp.ne.s32.totalorder %s188, %s189
    %p200 = scmp.eq.s32.totalorder %s18, 0
    %p201 = por %p199, %p200
    %p202 = scmp.ne.s32.totalorder %s188, %s189
    %p203 = scmp.eq.s32.totalorder %s19, 1
    %p204 = por %p202, %p203
    %p206 = scmp.ne.s32.totalorder %s189, %s205
    %p207 = scmp.eq.s32.totalorder %s19, 0
    %p208 = por %p206, %p207
    %p209 = scmp.le.s32.totalorder 1, %s13
    %p210 = scmp.lt.s32.totalorder %s13, 3
    %p211 = pnand %p209, %p210
    %p212 = pneg %p211
    // Predicated region
    $region9: #{edge_information_injector_forward.3} parent=5 // pred_check
      _
    $region10: #{edge_information_injector_forward.3} parent=5 // pred_check_branch
      %214 = sbr.rel (%p211) target = $region12
    $region11: #{edge_information_injector_forward.3} parent=5 // pred_region
      %s215 = ssub.s32 %s13, 1
      // Predicated region
      $region13: #{edge_information_injector_forward.3} parent=11 // pred_check
        %p216 = pneg %p60
      $region14: #{edge_information_injector_forward.3} parent=11 // pred_check_branch
        %218 = sbr.rel (%p216) target = $region16
      $region15: #{edge_information_injector_forward.3} parent=11 // pred_region
        _
      $region16: #{edge_information_injector_forward.3} parent=11 // pred_fallthru
        _
      // Predicated region
      $region17: #{edge_information_injector_forward.3} parent=11 // pred_check
        %p219 = pneg %p133
      $region18: #{edge_information_injector_forward.3} parent=11 // pred_check_branch
        %221 = sbr.rel (%p219) target = $region20
      $region19: #{edge_information_injector_forward.3} parent=11 // pred_region
        _
      $region20: #{edge_information_injector_forward.3} parent=11 // pred_fallthru
        _
      // Predicated region
      $region21: #{edge_information_injector_forward.3} parent=11 // pred_check
        %p222 = pneg %p154
      $region22: #{edge_information_injector_forward.3} parent=11 // pred_check_branch
        %224 = sbr.rel (%p222) target = $region24
      $region23: #{edge_information_injector_forward.3} parent=11 // pred_region
        _
      $region24: #{edge_information_injector_forward.3} parent=11 // pred_fallthru
        _
      // Predicated region
      $region25: #{edge_information_injector_forward.3} parent=11 // pred_check
        %p225 = pneg %p175
      $region26: #{edge_information_injector_forward.3} parent=11 // pred_check_branch
        %227 = sbr.rel (%p225) target = $region28
      $region27: #{edge_information_injector_forward.3} parent=11 // pred_region
        _
      $region28: #{edge_information_injector_forward.3} parent=11 // pred_fallthru
        _
    $region12: #{edge_information_injector_forward.3} parent=5 // pred_fallthru
      _
    %p228 = scmp.lt.s32.totalorder %s13, 2
    // Predicated region
    $region29: #{edge_information_injector_forward.3} parent=5 // pred_check
      %p229 = pneg %p228
    $region30: #{edge_information_injector_forward.3} parent=5 // pred_check_branch
      %231 = sbr.rel (%p229) target = $region32
    $region31: #{edge_information_injector_forward.3} parent=5 // pred_region
      // Predicated region
      $region33: #{edge_information_injector_forward.3} parent=31 // pred_check
        %p232 = pneg %p33
      $region34: #{edge_information_injector_forward.3} parent=31 // pred_check_branch
        %234 = sbr.rel (%p232) target = $region36
      $region35: #{edge_information_injector_forward.3} parent=31 // pred_region
        %p235 = scmp.lt.s32.totalorder %s13, 1
        %s236 = scalar_select %p235, %s13, 1
        %s237 = smul.addr %s236, 26
        %s238 = smul.addr %s237, 8
        %s239 = scalar_lea.vmem %s0, %s238
      $region36: #{edge_information_injector_forward.3} parent=31 // pred_fallthru
        _
      // Predicated region
      $region37: #{edge_information_injector_forward.3} parent=31 // pred_check
        %p240 = pneg %p80
      $region38: #{edge_information_injector_forward.3} parent=31 // pred_check_branch
        %242 = sbr.rel (%p240) target = $region40
      $region39: #{edge_information_injector_forward.3} parent=31 // pred_region
        %p243 = scmp.lt.s32.totalorder %s13, 1
        %s244 = scalar_select %p243, %s13, 1
        %s245 = smul.addr %s244, 32
        %s246 = smul.addr %s245, 8
        %s247 = scalar_lea.vmem %s2, %s246
      $region40: #{edge_information_injector_forward.3} parent=31 // pred_fallthru
        _
      // Predicated region
      $region41: #{edge_information_injector_forward.3} parent=31 // pred_check
        %p248 = pneg %p106
      $region42: #{edge_information_injector_forward.3} parent=31 // pred_check_branch
        %250 = sbr.rel (%p248) target = $region44
      $region43: #{edge_information_injector_forward.3} parent=31 // pred_region
        %p251 = scmp.lt.s32.totalorder %s13, 1
        %s252 = scalar_select %p251, %s13, 1
        %s253 = smul.addr %s252, 32
        %s254 = smul.addr %s253, 8
        %s255 = scalar_lea.vmem %s3, %s254
      $region44: #{edge_information_injector_forward.3} parent=31 // pred_fallthru
        _
    $region32: #{edge_information_injector_forward.3} parent=5 // pred_fallthru
      _
    %p256 = scmp.le.s32.totalorder 1, %s13
    %p257 = scmp.lt.s32.totalorder %s13, 3
    %p258 = pnand %p256, %p257
    %p259 = pneg %p258
    // Predicated region
    $region45: #{edge_information_injector_forward.3} parent=5 // pred_check
      _
    $region46: #{edge_information_injector_forward.3} parent=5 // pred_check_branch
      %261 = sbr.rel (%p258) target = $region48
    $region47: #{edge_information_injector_forward.3} parent=5 // pred_region
      %s262 = ssub.s32 %s13, 1
      %p263 = scmp.lt.s32.totalorder %s18, 1
      %s264 = scalar_select %p263, %s18, 1
      %s265 = smul.addr %s264, 26
      %s266 = smul.addr %s265, 8
      %s267 = scalar_lea.vmem %s0, %s266
      %p268 = pneg %p39
      %p269 = pneg %p36
      %p270 = pneg %p60
      %p271 = pneg %p57
      %p272 = scmp.lt.s32.totalorder %s18, 1
      %s273 = scalar_select %p272, %s18, 1
      %s274 = smul.addr %s273, 32
      %s275 = smul.addr %s274, 8
      %s276 = scalar_lea.vmem %s2, %s275
      %p277 = pneg %p86
      %p278 = pneg %p83
      %p279 = scmp.lt.s32.totalorder %s18, 1
      %s280 = scalar_select %p279, %s18, 1
      %s281 = smul.addr %s280, 32
      %s282 = smul.addr %s281, 8
      %s283 = scalar_lea.vmem %s3, %s282
      %p284 = pneg %p112
      %p285 = pneg %p109
      %p286 = pneg %p133
      %p287 = pneg %p130
      %p288 = pneg %p154
      %p289 = pneg %p151
      %p290 = pneg %p175
      %p291 = pneg %p172
      %p292 = pneg %p201
      %p293 = pneg %p198
      %p294 = scmp.lt.s32.totalorder %s18, 1
      %s295 = scalar_select %p294, %s18, 1
      %s296 = smul.addr %s295, 32
      %s297 = smul.addr %s296, 8
      %s298 = scalar_lea.vmem %s7, %s297
      %p299 = scmp.lt.s32.totalorder %s18, 1
      %s300 = scalar_select %p299, %s18, 1
      %s301 = smul.addr %s300, 26
      %s302 = smul.addr %s301, 8
      %s303 = scalar_lea.vmem %s0, %s302
      %p304 = scmp.lt.s32.totalorder %s18, 1
      %s305 = scalar_select %p304, %s18, 1
      %s306 = smul.addr %s305, 32
      %s307 = smul.addr %s306, 8
      %s308 = scalar_lea.vmem %s2, %s307
      %p309 = scmp.lt.s32.totalorder %s18, 1
      %s310 = scalar_select %p309, %s18, 1
      %s311 = smul.addr %s310, 32
      %s312 = smul.addr %s311, 8
      %s313 = scalar_lea.vmem %s3, %s312
      %p314 = scmp.lt.s32.totalorder %s18, 1
      %s315 = scalar_select %p314, %s18, 1
      %s316 = smul.addr %s315, 32
      %s317 = smul.addr %s316, 8
      %s318 = scalar_lea.vmem %s7, %s317
      %v319 = vld [vmem:[%s1] sm:$0xff]
      %v320 = vld [vmem:[%s1 + $0x8] sm:$0xff]
      %v321 = vld [vmem:[%s1 + $0x10] sm:$0xff]
      %v322 = vld [vmem:[%s1 + $0x18] sm:$0xff]
      %v323 = vld [vmem:[%s1 + $0x20] sm:$0xff]
      %v324 = vld [vmem:[%s1 + $0x28] sm:$0xff]
      %v325 = vld [vmem:[%s1 + $0x30] sm:$0xff]
      %v326 = vld [vmem:[%s1 + $0x38] sm:$0xff]
      %v327 = vld [vmem:[%s1 + $0x40] sm:$0xff]
      %v328 = vld [vmem:[%s1 + $0x48] sm:$0xff]
      %v329 = vld [vmem:[%s1 + $0x50] sm:$0xff]
      %v330 = vld [vmem:[%s1 + $0x58] sm:$0xff]
      %v331 = vld [vmem:[%s1 + $0x60] sm:$0x3]
      %v332 = vld [vmem:[%s303] sm:$0xff]
      %v333 = vld [vmem:[%s303 + $0x8] sm:$0xff]
      %v334 = vld [vmem:[%s303 + $0x10] sm:$0xff]
      %v335 = vld [vmem:[%s303 + $0x18] sm:$0xff]
      %v336 = vld [vmem:[%s303 + $0x20] sm:$0xff]
      %v337 = vld [vmem:[%s303 + $0x28] sm:$0xff]
      %v338 = vld [vmem:[%s303 + $0x30] sm:$0xff]
      %v339 = vld [vmem:[%s303 + $0x38] sm:$0xff]
      %v340 = vld [vmem:[%s303 + $0x40] sm:$0xff]
      %v341 = vld [vmem:[%s303 + $0x48] sm:$0xff]
      %v342 = vld [vmem:[%s303 + $0x50] sm:$0xff]
      %v343 = vld [vmem:[%s303 + $0x58] sm:$0xff]
      %v344 = vld [vmem:[%s303 + $0x60] sm:$0xff]
      %v345 = vld [vmem:[%s303 + $0x68] sm:$0xff]
      %v346 = vld [vmem:[%s303 + $0x70] sm:$0xff]
      %v347 = vld [vmem:[%s303 + $0x78] sm:$0xff]
      %v348 = vld [vmem:[%s303 + $0x80] sm:$0xff]
      %v349 = vld [vmem:[%s303 + $0x88] sm:$0xff]
      %v350 = vld [vmem:[%s303 + $0x90] sm:$0xff]
      %v351 = vld [vmem:[%s303 + $0x98] sm:$0xff]
      %v352 = vld [vmem:[%s303 + $0xa0] sm:$0xff]
      %v353 = vld [vmem:[%s303 + $0xa8] sm:$0xff]
      %v354 = vld [vmem:[%s303 + $0xb0] sm:$0xff]
      %v355 = vld [vmem:[%s303 + $0xb8] sm:$0xff]
      %v356 = vld [vmem:[%s303 + $0xc0] sm:$0x3]
      %v357 = vld [vmem:[%s303 + $0xc8] sm:$0x3]
      %359 = vset.pattern.permute.xlu0 0
      %360 = vperm.xlu0 %359, %v319
      %v361 = vpop.permute.xlu0 %360
      %364 = vset.pattern.permute.xlu0 0
      %365 = vperm.xlu0 %364, %v320
      %v366 = vpop.permute.xlu0 %365
      %369 = vset.pattern.permute.xlu0 0
      %370 = vperm.xlu0 %369, %v321
      %v371 = vpop.permute.xlu0 %370
      %374 = vset.pattern.permute.xlu0 0
      %375 = vperm.xlu0 %374, %v322
      %v376 = vpop.permute.xlu0 %375
      %379 = vset.pattern.permute.xlu0 0
      %380 = vperm.xlu0 %379, %v323
      %v381 = vpop.permute.xlu0 %380
      %384 = vset.pattern.permute.xlu0 0
      %385 = vperm.xlu0 %384, %v324
      %v386 = vpop.permute.xlu0 %385
      %389 = vset.pattern.permute.xlu0 0
      %390 = vperm.xlu0 %389, %v325
      %v391 = vpop.permute.xlu0 %390
      %394 = vset.pattern.permute.xlu0 0
      %395 = vperm.xlu0 %394, %v326
      %v396 = vpop.permute.xlu0 %395
      %399 = vset.pattern.permute.xlu0 0
      %400 = vperm.xlu0 %399, %v327
      %v401 = vpop.permute.xlu0 %400
      %404 = vset.pattern.permute.xlu0 0
      %405 = vperm.xlu0 %404, %v328
      %v406 = vpop.permute.xlu0 %405
      %409 = vset.pattern.permute.xlu0 0
      %410 = vperm.xlu0 %409, %v329
      %v411 = vpop.permute.xlu0 %410
      %414 = vset.pattern.permute.xlu0 0
      %415 = vperm.xlu0 %414, %v330
      %v416 = vpop.permute.xlu0 %415
      %419 = vset.pattern.permute.xlu0 0
      %420 = vperm.xlu0 %419, %v331
      %v421 = vpop.permute.xlu0 %420
      %v423 = vmul.f32 %v361, %v332
      %v424 = vmul.f32 %v361, %v333
      %v425 = vmul.f32 %v366, %v334
      %v426 = vmul.f32 %v366, %v335
      %v427 = vmul.f32 %v371, %v336
      %v428 = vmul.f32 %v371, %v337
      %v429 = vmul.f32 %v376, %v338
      %v430 = vmul.f32 %v376, %v339
      %v431 = vmul.f32 %v381, %v340
      %v432 = vmul.f32 %v381, %v341
      %v433 = vmul.f32 %v386, %v342
      %v434 = vmul.f32 %v386, %v343
      %v435 = vmul.f32 %v391, %v344
      %v436 = vmul.f32 %v391, %v345
      %v437 = vmul.f32 %v396, %v346
      %v438 = vmul.f32 %v396, %v347
      %v439 = vmul.f32 %v401, %v348
      %v440 = vmul.f32 %v401, %v349
      %v441 = vmul.f32 %v406, %v350
      %v442 = vmul.f32 %v406, %v351
      %v443 = vmul.f32 %v411, %v352
      %v444 = vmul.f32 %v411, %v353
      %v445 = vmul.f32 %v416, %v354
      %v446 = vmul.f32 %v416, %v355
      %v447 = vmul.f32 %v421, %v356
      %v448 = vmul.f32 %v421, %v357
      %v449 = vadd.f32 %v423, %v425
      %v450 = vadd.f32 %v449, %v427
      %v451 = vadd.f32 %v450, %v429
      %v452 = vadd.f32 %v451, %v431
      %v453 = vadd.f32 %v452, %v433
      %v454 = vadd.f32 %v453, %v435
      %v455 = vadd.f32 %v454, %v437
      %v456 = vadd.f32 %v455, %v439
      %v457 = vadd.f32 %v456, %v441
      %v458 = vadd.f32 %v457, %v443
      %v459 = vadd.f32 %v458, %v445
      %vm460 = vcmask 1041408
      %v461 = vsel %vm460, %v447, 0.0
      %v462 = vadd.f32 %v459, %v461
      %v463 = vrot.slane %v462, 4
      %v464 = vadd.f32 %v462, %v463
      %v465 = vrot.slane %v464, 2
      %v466 = vadd.f32 %v464, %v465
      %v467 = vrot.slane %v466, 1
      %v468 = vadd.f32 %v466, %v467
      %v469 = vadd.f32 %v424, %v426
      %v470 = vadd.f32 %v469, %v428
      %v471 = vadd.f32 %v470, %v430
      %v472 = vadd.f32 %v471, %v432
      %v473 = vadd.f32 %v472, %v434
      %v474 = vadd.f32 %v473, %v436
      %v475 = vadd.f32 %v474, %v438
      %v476 = vadd.f32 %v475, %v440
      %v477 = vadd.f32 %v476, %v442
      %v478 = vadd.f32 %v477, %v444
      %v479 = vadd.f32 %v478, %v446
      %v480 = vsel %vm460, %v448, 0.0
      %v481 = vadd.f32 %v479, %v480
      %v482 = vrot.slane %v481, 4
      %v483 = vadd.f32 %v481, %v482
      %v484 = vrot.slane %v483, 2
      %v485 = vadd.f32 %v483, %v484
      %v486 = vrot.slane %v485, 1
      %v487 = vadd.f32 %v485, %v486
      %v488 = vsub.f32 0.0, %v468
      %v489 = vsub.f32 0.0, %v487
      %v490 = vmul.f32 %v488, 1.442695
      %v491 = vpow.pop %v490
      %v492 = vmul.f32 %v489, 1.442695
      %v493 = vpow.pop %v492
      %v494 = vadd.f32 %v491, 1.0
      %v495 = vadd.f32 %v493, 1.0
      %v496 = vrcp.pop %v494
      %v497 = vmul.f32 1.0, %v496
      %v498 = vrcp.pop %v495
      %v499 = vmul.f32 1.0, %v498
      %v500 = vld [vmem:[%s313] sm:$0xff]
      %v501 = vld [vmem:[%s313 + $0x8] sm:$0xff]
      %v502 = vld [vmem:[%s313 + $0x10] sm:$0xff]
      %v503 = vld [vmem:[%s313 + $0x18] sm:$0xff]
      %v504 = vld [vmem:[%s313 + $0x20] sm:$0xff]
      %v505 = vld [vmem:[%s313 + $0x28] sm:$0xff]
      %v506 = vld [vmem:[%s313 + $0x30] sm:$0xff]
      %v507 = vld [vmem:[%s313 + $0x38] sm:$0xff]
      %v508 = vld [vmem:[%s313 + $0x40] sm:$0xff]
      %v509 = vld [vmem:[%s313 + $0x48] sm:$0xff]
      %v510 = vld [vmem:[%s313 + $0x50] sm:$0xff]
      %v511 = vld [vmem:[%s313 + $0x58] sm:$0xff]
      %v512 = vld [vmem:[%s313 + $0x60] sm:$0xff]
      %v513 = vld [vmem:[%s313 + $0x68] sm:$0xff]
      %v514 = vld [vmem:[%s313 + $0x70] sm:$0xff]
      %v515 = vld [vmem:[%s313 + $0x78] sm:$0xff]
      %v516 = vld [vmem:[%s313 + $0x80] sm:$0xff]
      %v517 = vld [vmem:[%s313 + $0x88] sm:$0xff]
      %v518 = vld [vmem:[%s313 + $0x90] sm:$0xff]
      %v519 = vld [vmem:[%s313 + $0x98] sm:$0xff]
      %v520 = vld [vmem:[%s313 + $0xa0] sm:$0xff]
      %v521 = vld [vmem:[%s313 + $0xa8] sm:$0xff]
      %v522 = vld [vmem:[%s313 + $0xb0] sm:$0xff]
      %v523 = vld [vmem:[%s313 + $0xb8] sm:$0xff]
      %v524 = vld [vmem:[%s313 + $0xc0] sm:$0xff]
      %v525 = vld [vmem:[%s313 + $0xc8] sm:$0xff]
      %v526 = vld [vmem:[%s313 + $0xd0] sm:$0xff]
      %v527 = vld [vmem:[%s313 + $0xd8] sm:$0xff]
      %v528 = vld [vmem:[%s313 + $0xe0] sm:$0xff]
      %v529 = vld [vmem:[%s313 + $0xe8] sm:$0xff]
      %v530 = vld [vmem:[%s313 + $0xf0] sm:$0xff]
      %v531 = vld [vmem:[%s313 + $0xf8] sm:$0xff]
      %v532 = vmul.f32 %v500, %v497
      %v533 = vmul.f32 %v501, %v499
      %v534 = vmul.f32 %v502, %v497
      %v535 = vmul.f32 %v503, %v499
      %v536 = vmul.f32 %v504, %v497
      %v537 = vmul.f32 %v505, %v499
      %v538 = vmul.f32 %v506, %v497
      %v539 = vmul.f32 %v507, %v499
      %v540 = vmul.f32 %v508, %v497
      %v541 = vmul.f32 %v509, %v499
      %v542 = vmul.f32 %v510, %v497
      %v543 = vmul.f32 %v511, %v499
      %v544 = vmul.f32 %v512, %v497
      %v545 = vmul.f32 %v513, %v499
      %v546 = vmul.f32 %v514, %v497
      %v547 = vmul.f32 %v515, %v499
      %v548 = vmul.f32 %v516, %v497
      %v549 = vmul.f32 %v517, %v499
      %v550 = vmul.f32 %v518, %v497
      %v551 = vmul.f32 %v519, %v499
      %v552 = vmul.f32 %v520, %v497
      %v553 = vmul.f32 %v521, %v499
      %v554 = vmul.f32 %v522, %v497
      %v555 = vmul.f32 %v523, %v499
      %v556 = vmul.f32 %v524, %v497
      %v557 = vmul.f32 %v525, %v499
      %v558 = vmul.f32 %v526, %v497
      %v559 = vmul.f32 %v527, %v499
      %v560 = vmul.f32 %v528, %v497
      %v561 = vmul.f32 %v529, %v499
      %v562 = vmul.f32 %v530, %v497
      %v563 = vmul.f32 %v531, %v499
      %v564 = vld [vmem:[%s4] sm:$0xff]
      %v565 = vld [vmem:[%s4 + $0x8] sm:$0xff]
      %v566 = vld [vmem:[%s4 + $0x10] sm:$0xff]
      %v567 = vld [vmem:[%s4 + $0x18] sm:$0xff]
      %v568 = vld [vmem:[%s4 + $0x20] sm:$0xff]
      %v569 = vld [vmem:[%s4 + $0x28] sm:$0xff]
      %v570 = vld [vmem:[%s4 + $0x30] sm:$0xff]
      %v571 = vld [vmem:[%s4 + $0x38] sm:$0xff]
      %v572 = vld [vmem:[%s4 + $0x40] sm:$0xff]
      %v573 = vld [vmem:[%s4 + $0x48] sm:$0xff]
      %v574 = vld [vmem:[%s4 + $0x50] sm:$0xff]
      %v575 = vld [vmem:[%s4 + $0x58] sm:$0xff]
      %v576 = vld [vmem:[%s4 + $0x60] sm:$0xff]
      %v577 = vld [vmem:[%s4 + $0x68] sm:$0xff]
      %v578 = vld [vmem:[%s4 + $0x70] sm:$0xff]
      %v579 = vld [vmem:[%s4 + $0x78] sm:$0xff]
      %v580 = vld [vmem:[%s308] sm:$0xff]
      %v581 = vld [vmem:[%s308 + $0x8] sm:$0xff]
      %v582 = vld [vmem:[%s308 + $0x10] sm:$0xff]
      %v583 = vld [vmem:[%s308 + $0x18] sm:$0xff]
      %v584 = vld [vmem:[%s308 + $0x20] sm:$0xff]
      %v585 = vld [vmem:[%s308 + $0x28] sm:$0xff]
      %v586 = vld [vmem:[%s308 + $0x30] sm:$0xff]
      %v587 = vld [vmem:[%s308 + $0x38] sm:$0xff]
      %v588 = vld [vmem:[%s308 + $0x40] sm:$0xff]
      %v589 = vld [vmem:[%s308 + $0x48] sm:$0xff]
      %v590 = vld [vmem:[%s308 + $0x50] sm:$0xff]
      %v591 = vld [vmem:[%s308 + $0x58] sm:$0xff]
      %v592 = vld [vmem:[%s308 + $0x60] sm:$0xff]
      %v593 = vld [vmem:[%s308 + $0x68] sm:$0xff]
      %v594 = vld [vmem:[%s308 + $0x70] sm:$0xff]
      %v595 = vld [vmem:[%s308 + $0x78] sm:$0xff]
      %v596 = vld [vmem:[%s308 + $0x80] sm:$0xff]
      %v597 = vld [vmem:[%s308 + $0x88] sm:$0xff]
      %v598 = vld [vmem:[%s308 + $0x90] sm:$0xff]
      %v599 = vld [vmem:[%s308 + $0x98] sm:$0xff]
      %v600 = vld [vmem:[%s308 + $0xa0] sm:$0xff]
      %v601 = vld [vmem:[%s308 + $0xa8] sm:$0xff]
      %v602 = vld [vmem:[%s308 + $0xb0] sm:$0xff]
      %v603 = vld [vmem:[%s308 + $0xb8] sm:$0xff]
      %v604 = vld [vmem:[%s308 + $0xc0] sm:$0xff]
      %v605 = vld [vmem:[%s308 + $0xc8] sm:$0xff]
      %v606 = vld [vmem:[%s308 + $0xd0] sm:$0xff]
      %v607 = vld [vmem:[%s308 + $0xd8] sm:$0xff]
      %v608 = vld [vmem:[%s308 + $0xe0] sm:$0xff]
      %v609 = vld [vmem:[%s308 + $0xe8] sm:$0xff]
      %v610 = vld [vmem:[%s308 + $0xf0] sm:$0xff]
      %v611 = vld [vmem:[%s308 + $0xf8] sm:$0xff]
      %v612 = vld [vmem:[%s5] sm:$0xff]
      %v613 = vld [vmem:[%s5 + $0x8] sm:$0xff]
      %v614 = vld [vmem:[%s5 + $0x10] sm:$0xff]
      %v615 = vld [vmem:[%s5 + $0x18] sm:$0xff]
      %v616 = vld [vmem:[%s5 + $0x20] sm:$0xff]
      %v617 = vld [vmem:[%s5 + $0x28] sm:$0xff]
      %v618 = vld [vmem:[%s5 + $0x30] sm:$0xff]
      %v619 = vld [vmem:[%s5 + $0x38] sm:$0xff]
      %v620 = vld [vmem:[%s5 + $0x40] sm:$0xff]
      %v621 = vld [vmem:[%s5 + $0x48] sm:$0xff]
      %v622 = vld [vmem:[%s5 + $0x50] sm:$0xff]
      %v623 = vld [vmem:[%s5 + $0x58] sm:$0xff]
      %v624 = vld [vmem:[%s5 + $0x60] sm:$0xff]
      %v625 = vld [vmem:[%s5 + $0x68] sm:$0xff]
      %v626 = vld [vmem:[%s5 + $0x70] sm:$0xff]
      %v627 = vld [vmem:[%s5 + $0x78] sm:$0xff]
      %628 = vmatprep.subr.mxu0 %v563
      %629 = vmatpush1.msra.mxu0 %v562
      %630 = vmatprep.subr.mxu0 %v561
      %631 = vmatpush1.msra.mxu0 %v560
      %632 = vmatprep.subr.mxu0 %v559
      %633 = vmatpush1.msra.mxu0 %v558
      %634 = vmatprep.subr.mxu0 %v557
      %635 = vmatpush1.msra.mxu0 %v556
      %636 = vmatprep.subr.mxu0 %v555
      %637 = vmatpush1.msra.mxu0 %v554
      %638 = vmatprep.subr.mxu0 %v553
      %639 = vmatpush1.msra.mxu0 %v552
      %640 = vmatprep.subr.mxu0 %v551
      %641 = vmatpush1.msra.mxu0 %v550
      %642 = vmatprep.subr.mxu0 %v549
      %643 = vmatpush1.msra.mxu0 %v548
      %644 = vmatprep.subr.mxu0 %v547
      %645 = vmatpush1.msra.mxu0 %v546
      %646 = vmatprep.subr.mxu0 %v545
      %647 = vmatpush1.msra.mxu0 %v544
      %648 = vmatprep.subr.mxu0 %v543
      %649 = vmatpush1.msra.mxu0 %v542
      %650 = vmatprep.subr.mxu0 %v541
      %651 = vmatpush1.msra.mxu0 %v540
      %652 = vmatprep.subr.mxu0 %v539
      %653 = vmatpush1.msra.mxu0 %v538
      %654 = vmatprep.subr.mxu0 %v537
      %655 = vmatpush1.msra.mxu0 %v536
      %656 = vmatprep.subr.mxu0 %v535
      %657 = vmatpush1.msra.mxu0 %v534
      %658 = vmatprep.subr.mxu0 %v533
      %659 = vmatpush1.msra.mxu0 %v532
      %660 = vmatprep.subr.mxu0 0.0
      %661 = vmatpush2.msra.mxu0 0.0
      %662 = vmatprep.subr.mxu0 0.0
      %663 = vmatpush2.msra.mxu0 0.0
      %664 = vmatprep.subr.mxu0 0.0
      %665 = vmatpush2.msra.mxu0 0.0
      %666 = vmatprep.subr.mxu0 0.0
      %667 = vmatpush2.msra.mxu0 0.0
      %668 = vmatprep.subr.mxu0 0.0
      %669 = vmatpush2.msra.mxu0 0.0
      %670 = vmatprep.subr.mxu0 0.0
      %671 = vmatpush2.msra.mxu0 0.0
      %672 = vmatprep.subr.mxu0 0.0
      %673 = vmatpush2.msra.mxu0 0.0
      %674 = vmatprep.subr.mxu0 0.0
      %675 = vmatpush2.msra.mxu0 0.0
      %676 = vmatprep.subr.mxu0 0.0
      %677 = vmatpush2.msra.mxu0 0.0
      %678 = vmatprep.subr.mxu0 0.0
      %679 = vmatpush2.msra.mxu0 0.0
      %680 = vmatprep.subr.mxu0 0.0
      %681 = vmatpush2.msra.mxu0 0.0
      %682 = vmatprep.subr.mxu0 0.0
      %683 = vmatpush2.msra.mxu0 0.0
      %684 = vmatprep.subr.mxu0 0.0
      %685 = vmatpush2.msra.mxu0 0.0
      %686 = vmatprep.subr.mxu0 0.0
      %687 = vmatpush2.msra.mxu0 0.0
      %688 = vmatprep.subr.mxu0 0.0
      %689 = vmatpush2.msra.mxu0 0.0
      %690 = vmatprep.subr.mxu0 0.0
      %691 = vmatpush2.msra.mxu0 0.0
      %692 = vmatprep.mubr.f32.mxu0 0.0
      %693 = vmatmul.mubr.f32.gmra.mxu0 %v612
      %v694 = vpop.f32.mrf.mxu0
      %v695 = vadd.f32 0.0, %v694
      %v696 = vpop.f32.mrf.mxu0
      %v697 = vadd.f32 0.0, %v696
      %698 = vmatprep.mubr.f32.mxu0 0.0
      %699 = vmatmul.mubr.f32.gmra.mxu0 %v613
      %v700 = vpop.f32.mrf.mxu0
      %v701 = vadd.f32 0.0, %v700
      %v702 = vpop.f32.mrf.mxu0
      %v703 = vadd.f32 0.0, %v702
      %704 = vmatprep.mubr.f32.mxu0 0.0
      %705 = vmatmul.mubr.f32.gmra.mxu0 %v614
      %v706 = vpop.f32.mrf.mxu0
      %v707 = vadd.f32 0.0, %v706
      %v708 = vpop.f32.mrf.mxu0
      %v709 = vadd.f32 0.0, %v708
      %710 = vmatprep.mubr.f32.mxu0 0.0
      %711 = vmatmul.mubr.f32.gmra.mxu0 %v615
      %v712 = vpop.f32.mrf.mxu0
      %v713 = vadd.f32 0.0, %v712
      %v714 = vpop.f32.mrf.mxu0
      %v715 = vadd.f32 0.0, %v714
      %716 = vmatprep.mubr.f32.mxu0 0.0
      %717 = vmatmul.mubr.f32.gmra.mxu0 %v616
      %v718 = vpop.f32.mrf.mxu0
      %v719 = vadd.f32 0.0, %v718
      %v720 = vpop.f32.mrf.mxu0
      %v721 = vadd.f32 0.0, %v720
      %722 = vmatprep.mubr.f32.mxu0 0.0
      %723 = vmatmul.mubr.f32.gmra.mxu0 %v617
      %v724 = vpop.f32.mrf.mxu0
      %v725 = vadd.f32 0.0, %v724
      %v726 = vpop.f32.mrf.mxu0
      %v727 = vadd.f32 0.0, %v726
      %728 = vmatprep.mubr.f32.mxu0 0.0
      %729 = vmatmul.mubr.f32.gmra.mxu0 %v618
      %v730 = vpop.f32.mrf.mxu0
      %v731 = vadd.f32 0.0, %v730
      %v732 = vpop.f32.mrf.mxu0
      %v733 = vadd.f32 0.0, %v732
      %734 = vmatprep.mubr.f32.mxu0 0.0
      %735 = vmatmul.mubr.f32.gmra.mxu0 %v619
      %v736 = vpop.f32.mrf.mxu0
      %v737 = vadd.f32 0.0, %v736
      %v738 = vpop.f32.mrf.mxu0
      %v739 = vadd.f32 0.0, %v738
      %740 = vmatprep.mubr.f32.mxu0 0.0
      %741 = vmatmul.mubr.f32.gmra.mxu0 %v620
      %v742 = vpop.f32.mrf.mxu0
      %v743 = vadd.f32 0.0, %v742
      %v744 = vpop.f32.mrf.mxu0
      %v745 = vadd.f32 0.0, %v744
      %746 = vmatprep.mubr.f32.mxu0 0.0
      %747 = vmatmul.mubr.f32.gmra.mxu0 %v621
      %v748 = vpop.f32.mrf.mxu0
      %v749 = vadd.f32 0.0, %v748
      %v750 = vpop.f32.mrf.mxu0
      %v751 = vadd.f32 0.0, %v750
      %752 = vmatprep.mubr.f32.mxu0 0.0
      %753 = vmatmul.mubr.f32.gmra.mxu0 %v622
      %v754 = vpop.f32.mrf.mxu0
      %v755 = vadd.f32 0.0, %v754
      %v756 = vpop.f32.mrf.mxu0
      %v757 = vadd.f32 0.0, %v756
      %758 = vmatprep.mubr.f32.mxu0 0.0
      %759 = vmatmul.mubr.f32.gmra.mxu0 %v623
      %v760 = vpop.f32.mrf.mxu0
      %v761 = vadd.f32 0.0, %v760
      %v762 = vpop.f32.mrf.mxu0
      %v763 = vadd.f32 0.0, %v762
      %764 = vmatprep.mubr.f32.mxu0 0.0
      %765 = vmatmul.mubr.f32.gmra.mxu0 %v624
      %v766 = vpop.f32.mrf.mxu0
      %v767 = vadd.f32 0.0, %v766
      %v768 = vpop.f32.mrf.mxu0
      %v769 = vadd.f32 0.0, %v768
      %770 = vmatprep.mubr.f32.mxu0 0.0
      %771 = vmatmul.mubr.f32.gmra.mxu0 %v625
      %v772 = vpop.f32.mrf.mxu0
      %v773 = vadd.f32 0.0, %v772
      %v774 = vpop.f32.mrf.mxu0
      %v775 = vadd.f32 0.0, %v774
      %776 = vmatprep.mubr.f32.mxu0 0.0
      %777 = vmatmul.mubr.f32.gmra.mxu0 %v626
      %v778 = vpop.f32.mrf.mxu0
      %v779 = vadd.f32 0.0, %v778
      %v780 = vpop.f32.mrf.mxu0
      %v781 = vadd.f32 0.0, %v780
      %782 = vmatprep.mubr.f32.mxu0 0.0
      %783 = vmatmul.mubr.f32.gmra.mxu0 %v627
      %v784 = vpop.f32.mrf.mxu0
      %v785 = vadd.f32 0.0, %v784
      %v786 = vpop.f32.mrf.mxu0
      %v787 = vadd.f32 0.0, %v786
      %788 = vdwg.mxu0
      %789 = vmatprep.subr.mxu0 %v611
      %790 = vmatpush1.msra.mxu0 %v610
      %791 = vmatprep.subr.mxu0 %v609
      %792 = vmatpush1.msra.mxu0 %v608
      %793 = vmatprep.subr.mxu0 %v607
      %794 = vmatpush1.msra.mxu0 %v606
      %795 = vmatprep.subr.mxu0 %v605
      %796 = vmatpush1.msra.mxu0 %v604
      %797 = vmatprep.subr.mxu0 %v603
      %798 = vmatpush1.msra.mxu0 %v602
      %799 = vmatprep.subr.mxu0 %v601
      %800 = vmatpush1.msra.mxu0 %v600
      %801 = vmatprep.subr.mxu0 %v599
      %802 = vmatpush1.msra.mxu0 %v598
      %803 = vmatprep.subr.mxu0 %v597
      %804 = vmatpush1.msra.mxu0 %v596
      %805 = vmatprep.subr.mxu0 %v595
      %806 = vmatpush1.msra.mxu0 %v594
      %807 = vmatprep.subr.mxu0 %v593
      %808 = vmatpush1.msra.mxu0 %v592
      %809 = vmatprep.subr.mxu0 %v591
      %810 = vmatpush1.msra.mxu0 %v590
      %811 = vmatprep.subr.mxu0 %v589
      %812 = vmatpush1.msra.mxu0 %v588
      %813 = vmatprep.subr.mxu0 %v587
      %814 = vmatpush1.msra.mxu0 %v586
      %815 = vmatprep.subr.mxu0 %v585
      %816 = vmatpush1.msra.mxu0 %v584
      %817 = vmatprep.subr.mxu0 %v583
      %818 = vmatpush1.msra.mxu0 %v582
      %819 = vmatprep.subr.mxu0 %v581
      %820 = vmatpush1.msra.mxu0 %v580
      %821 = vmatprep.subr.mxu0 0.0
      %822 = vmatpush2.msra.mxu0 0.0
      %823 = vmatprep.subr.mxu0 0.0
      %824 = vmatpush2.msra.mxu0 0.0
      %825 = vmatprep.subr.mxu0 0.0
      %826 = vmatpush2.msra.mxu0 0.0
      %827 = vmatprep.subr.mxu0 0.0
      %828 = vmatpush2.msra.mxu0 0.0
      %829 = vmatprep.subr.mxu0 0.0
      %830 = vmatpush2.msra.mxu0 0.0
      %831 = vmatprep.subr.mxu0 0.0
      %832 = vmatpush2.msra.mxu0 0.0
      %833 = vmatprep.subr.mxu0 0.0
      %834 = vmatpush2.msra.mxu0 0.0
      %835 = vmatprep.subr.mxu0 0.0
      %836 = vmatpush2.msra.mxu0 0.0
      %837 = vmatprep.subr.mxu0 0.0
      %838 = vmatpush2.msra.mxu0 0.0
      %839 = vmatprep.subr.mxu0 0.0
      %840 = vmatpush2.msra.mxu0 0.0
      %841 = vmatprep.subr.mxu0 0.0
      %842 = vmatpush2.msra.mxu0 0.0
      %843 = vmatprep.subr.mxu0 0.0
      %844 = vmatpush2.msra.mxu0 0.0
      %845 = vmatprep.subr.mxu0 0.0
      %846 = vmatpush2.msra.mxu0 0.0
      %847 = vmatprep.subr.mxu0 0.0
      %848 = vmatpush2.msra.mxu0 0.0
      %849 = vmatprep.subr.mxu0 0.0
      %850 = vmatpush2.msra.mxu0 0.0
      %851 = vmatprep.subr.mxu0 0.0
      %852 = vmatpush2.msra.mxu0 0.0
      %853 = vmatprep.mubr.f32.mxu0 0.0
      %854 = vmatmul.mubr.f32.gmra.mxu0 %v564
      %v855 = vpop.f32.mrf.mxu0
      %v856 = vadd.f32 %v695, %v855
      %v857 = vpop.f32.mrf.mxu0
      %v858 = vadd.f32 %v697, %v857
      %859 = vmatprep.mubr.f32.mxu0 0.0
      %860 = vmatmul.mubr.f32.gmra.mxu0 %v565
      %v861 = vpop.f32.mrf.mxu0
      %v862 = vadd.f32 %v701, %v861
      %v863 = vpop.f32.mrf.mxu0
      %v864 = vadd.f32 %v703, %v863
      %865 = vmatprep.mubr.f32.mxu0 0.0
      %866 = vmatmul.mubr.f32.gmra.mxu0 %v566
      %v867 = vpop.f32.mrf.mxu0
      %v868 = vadd.f32 %v707, %v867
      %v869 = vpop.f32.mrf.mxu0
      %v870 = vadd.f32 %v709, %v869
      %871 = vmatprep.mubr.f32.mxu0 0.0
      %872 = vmatmul.mubr.f32.gmra.mxu0 %v567
      %v873 = vpop.f32.mrf.mxu0
      %v874 = vadd.f32 %v713, %v873
      %v875 = vpop.f32.mrf.mxu0
      %v876 = vadd.f32 %v715, %v875
      %877 = vmatprep.mubr.f32.mxu0 0.0
      %878 = vmatmul.mubr.f32.gmra.mxu0 %v568
      %v879 = vpop.f32.mrf.mxu0
      %v880 = vadd.f32 %v719, %v879
      %v881 = vpop.f32.mrf.mxu0
      %v882 = vadd.f32 %v721, %v881
      %883 = vmatprep.mubr.f32.mxu0 0.0
      %884 = vmatmul.mubr.f32.gmra.mxu0 %v569
      %v885 = vpop.f32.mrf.mxu0
      %v886 = vadd.f32 %v725, %v885
      %v887 = vpop.f32.mrf.mxu0
      %v888 = vadd.f32 %v727, %v887
      %889 = vmatprep.mubr.f32.mxu0 0.0
      %890 = vmatmul.mubr.f32.gmra.mxu0 %v570
      %v891 = vpop.f32.mrf.mxu0
      %v892 = vadd.f32 %v731, %v891
      %v893 = vpop.f32.mrf.mxu0
      %v894 = vadd.f32 %v733, %v893
      %895 = vmatprep.mubr.f32.mxu0 0.0
      %896 = vmatmul.mubr.f32.gmra.mxu0 %v571
      %v897 = vpop.f32.mrf.mxu0
      %v898 = vadd.f32 %v737, %v897
      %v899 = vpop.f32.mrf.mxu0
      %v900 = vadd.f32 %v739, %v899
      %901 = vmatprep.mubr.f32.mxu0 0.0
      %902 = vmatmul.mubr.f32.gmra.mxu0 %v572
      %v903 = vpop.f32.mrf.mxu0
      %v904 = vadd.f32 %v743, %v903
      %v905 = vpop.f32.mrf.mxu0
      %v906 = vadd.f32 %v745, %v905
      %907 = vmatprep.mubr.f32.mxu0 0.0
      %908 = vmatmul.mubr.f32.gmra.mxu0 %v573
      %v909 = vpop.f32.mrf.mxu0
      %v910 = vadd.f32 %v749, %v909
      %v911 = vpop.f32.mrf.mxu0
      %v912 = vadd.f32 %v751, %v911
      %913 = vmatprep.mubr.f32.mxu0 0.0
      %914 = vmatmul.mubr.f32.gmra.mxu0 %v574
      %v915 = vpop.f32.mrf.mxu0
      %v916 = vadd.f32 %v755, %v915
      %v917 = vpop.f32.mrf.mxu0
      %v918 = vadd.f32 %v757, %v917
      %919 = vmatprep.mubr.f32.mxu0 0.0
      %920 = vmatmul.mubr.f32.gmra.mxu0 %v575
      %v921 = vpop.f32.mrf.mxu0
      %v922 = vadd.f32 %v761, %v921
      %v923 = vpop.f32.mrf.mxu0
      %v924 = vadd.f32 %v763, %v923
      %925 = vmatprep.mubr.f32.mxu0 0.0
      %926 = vmatmul.mubr.f32.gmra.mxu0 %v576
      %v927 = vpop.f32.mrf.mxu0
      %v928 = vadd.f32 %v767, %v927
      %v929 = vpop.f32.mrf.mxu0
      %v930 = vadd.f32 %v769, %v929
      %931 = vmatprep.mubr.f32.mxu0 0.0
      %932 = vmatmul.mubr.f32.gmra.mxu0 %v577
      %v933 = vpop.f32.mrf.mxu0
      %v934 = vadd.f32 %v773, %v933
      %v935 = vpop.f32.mrf.mxu0
      %v936 = vadd.f32 %v775, %v935
      %937 = vmatprep.mubr.f32.mxu0 0.0
      %938 = vmatmul.mubr.f32.gmra.mxu0 %v578
      %v939 = vpop.f32.mrf.mxu0
      %v940 = vadd.f32 %v779, %v939
      %v941 = vpop.f32.mrf.mxu0
      %v942 = vadd.f32 %v781, %v941
      %943 = vmatprep.mubr.f32.mxu0 0.0
      %944 = vmatmul.mubr.f32.gmra.mxu0 %v579
      %v945 = vpop.f32.mrf.mxu0
      %v946 = vadd.f32 %v785, %v945
      %v947 = vpop.f32.mrf.mxu0
      %v948 = vadd.f32 %v787, %v947
      %949 = vdwg.mxu0
      %v950 = vld [vmem:[%s6] sm:$0xff]
      %v951 = vld [vmem:[%s6 + $0x8] sm:$0xff]
      %v952 = vld [vmem:[%s6 + $0x10] sm:$0xff]
      %v953 = vld [vmem:[%s6 + $0x18] sm:$0xff]
      %v954 = vld [vmem:[%s6 + $0x20] sm:$0xff]
      %v955 = vld [vmem:[%s6 + $0x28] sm:$0xff]
      %v956 = vld [vmem:[%s6 + $0x30] sm:$0xff]
      %v957 = vld [vmem:[%s6 + $0x38] sm:$0xff]
      %v958 = vld [vmem:[%s6 + $0x40] sm:$0xff]
      %v959 = vld [vmem:[%s6 + $0x48] sm:$0xff]
      %v960 = vld [vmem:[%s6 + $0x50] sm:$0xff]
      %v961 = vld [vmem:[%s6 + $0x58] sm:$0xff]
      %v962 = vld [vmem:[%s6 + $0x60] sm:$0xff]
      %v963 = vld [vmem:[%s6 + $0x68] sm:$0xff]
      %v964 = vld [vmem:[%s6 + $0x70] sm:$0xff]
      %v965 = vld [vmem:[%s6 + $0x78] sm:$0xff]
      %967 = vset.pattern.permute.xlu0 0
      %968 = vperm.xlu0 %967, %v950
      %v969 = vpop.permute.xlu0 %968
      %972 = vset.pattern.permute.xlu0 0
      %973 = vperm.xlu0 %972, %v951
      %v974 = vpop.permute.xlu0 %973
      %977 = vset.pattern.permute.xlu0 0
      %978 = vperm.xlu0 %977, %v952
      %v979 = vpop.permute.xlu0 %978
      %982 = vset.pattern.permute.xlu0 0
      %983 = vperm.xlu0 %982, %v953
      %v984 = vpop.permute.xlu0 %983
      %987 = vset.pattern.permute.xlu0 0
      %988 = vperm.xlu0 %987, %v954
      %v989 = vpop.permute.xlu0 %988
      %992 = vset.pattern.permute.xlu0 0
      %993 = vperm.xlu0 %992, %v955
      %v994 = vpop.permute.xlu0 %993
      %997 = vset.pattern.permute.xlu0 0
      %998 = vperm.xlu0 %997, %v956
      %v999 = vpop.permute.xlu0 %998
      %1002 = vset.pattern.permute.xlu0 0
      %1003 = vperm.xlu0 %1002, %v957
      %v1004 = vpop.permute.xlu0 %1003
      %1007 = vset.pattern.permute.xlu0 0
      %1008 = vperm.xlu0 %1007, %v958
      %v1009 = vpop.permute.xlu0 %1008
      %1012 = vset.pattern.permute.xlu0 0
      %1013 = vperm.xlu0 %1012, %v959
      %v1014 = vpop.permute.xlu0 %1013
      %1017 = vset.pattern.permute.xlu0 0
      %1018 = vperm.xlu0 %1017, %v960
      %v1019 = vpop.permute.xlu0 %1018
      %1022 = vset.pattern.permute.xlu0 0
      %1023 = vperm.xlu0 %1022, %v961
      %v1024 = vpop.permute.xlu0 %1023
      %1027 = vset.pattern.permute.xlu0 0
      %1028 = vperm.xlu0 %1027, %v962
      %v1029 = vpop.permute.xlu0 %1028
      %1032 = vset.pattern.permute.xlu0 0
      %1033 = vperm.xlu0 %1032, %v963
      %v1034 = vpop.permute.xlu0 %1033
      %1037 = vset.pattern.permute.xlu0 0
      %1038 = vperm.xlu0 %1037, %v964
      %v1039 = vpop.permute.xlu0 %1038
      %1042 = vset.pattern.permute.xlu0 0
      %1043 = vperm.xlu0 %1042, %v965
      %v1044 = vpop.permute.xlu0 %1043
      %v1046 = vadd.f32 %v856, %v969
      %v1047 = vadd.f32 %v858, %v969
      %v1048 = vadd.f32 %v862, %v974
      %v1049 = vadd.f32 %v864, %v974
      %v1050 = vadd.f32 %v868, %v979
      %v1051 = vadd.f32 %v870, %v979
      %v1052 = vadd.f32 %v874, %v984
      %v1053 = vadd.f32 %v876, %v984
      %v1054 = vadd.f32 %v880, %v989
      %v1055 = vadd.f32 %v882, %v989
      %v1056 = vadd.f32 %v886, %v994
      %v1057 = vadd.f32 %v888, %v994
      %v1058 = vadd.f32 %v892, %v999
      %v1059 = vadd.f32 %v894, %v999
      %v1060 = vadd.f32 %v898, %v1004
      %v1061 = vadd.f32 %v900, %v1004
      %v1062 = vadd.f32 %v904, %v1009
      %v1063 = vadd.f32 %v906, %v1009
      %v1064 = vadd.f32 %v910, %v1014
      %v1065 = vadd.f32 %v912, %v1014
      %v1066 = vadd.f32 %v916, %v1019
      %v1067 = vadd.f32 %v918, %v1019
      %v1068 = vadd.f32 %v922, %v1024
      %v1069 = vadd.f32 %v924, %v1024
      %v1070 = vadd.f32 %v928, %v1029
      %v1071 = vadd.f32 %v930, %v1029
      %v1072 = vadd.f32 %v934, %v1034
      %v1073 = vadd.f32 %v936, %v1034
      %v1074 = vadd.f32 %v940, %v1039
      %v1075 = vadd.f32 %v942, %v1039
      %v1076 = vadd.f32 %v946, %v1044
      %v1077 = vadd.f32 %v948, %v1044
      %1078 = vst [vmem:[%s318] sm:$0xff] %v1046
      %1079 = vst [vmem:[%s318 + $0x8] sm:$0xff] %v1047
      %1080 = vst [vmem:[%s318 + $0x10] sm:$0xff] %v1048
      %1081 = vst [vmem:[%s318 + $0x18] sm:$0xff] %v1049
      %1082 = vst [vmem:[%s318 + $0x20] sm:$0xff] %v1050
      %1083 = vst [vmem:[%s318 + $0x28] sm:$0xff] %v1051
      %1084 = vst [vmem:[%s318 + $0x30] sm:$0xff] %v1052
      %1085 = vst [vmem:[%s318 + $0x38] sm:$0xff] %v1053
      %1086 = vst [vmem:[%s318 + $0x40] sm:$0xff] %v1054
      %1087 = vst [vmem:[%s318 + $0x48] sm:$0xff] %v1055
      %1088 = vst [vmem:[%s318 + $0x50] sm:$0xff] %v1056
      %1089 = vst [vmem:[%s318 + $0x58] sm:$0xff] %v1057
      %1090 = vst [vmem:[%s318 + $0x60] sm:$0xff] %v1058
      %1091 = vst [vmem:[%s318 + $0x68] sm:$0xff] %v1059
      %1092 = vst [vmem:[%s318 + $0x70] sm:$0xff] %v1060
      %1093 = vst [vmem:[%s318 + $0x78] sm:$0xff] %v1061
      %1094 = vst [vmem:[%s318 + $0x80] sm:$0xff] %v1062
      %1095 = vst [vmem:[%s318 + $0x88] sm:$0xff] %v1063
      %1096 = vst [vmem:[%s318 + $0x90] sm:$0xff] %v1064
      %1097 = vst [vmem:[%s318 + $0x98] sm:$0xff] %v1065
      %1098 = vst [vmem:[%s318 + $0xa0] sm:$0xff] %v1066
      %1099 = vst [vmem:[%s318 + $0xa8] sm:$0xff] %v1067
      %1100 = vst [vmem:[%s318 + $0xb0] sm:$0xff] %v1068
      %1101 = vst [vmem:[%s318 + $0xb8] sm:$0xff] %v1069
      %1102 = vst [vmem:[%s318 + $0xc0] sm:$0xff] %v1070
      %1103 = vst [vmem:[%s318 + $0xc8] sm:$0xff] %v1071
      %1104 = vst [vmem:[%s318 + $0xd0] sm:$0xff] %v1072
      %1105 = vst [vmem:[%s318 + $0xd8] sm:$0xff] %v1073
      %1106 = vst [vmem:[%s318 + $0xe0] sm:$0xff] %v1074
      %1107 = vst [vmem:[%s318 + $0xe8] sm:$0xff] %v1075
      %1108 = vst [vmem:[%s318 + $0xf0] sm:$0xff] %v1076
      %1109 = vst [vmem:[%s318 + $0xf8] sm:$0xff] %v1077
      %p1110 = scmp.lt.s32.totalorder %s18, 1
      %s1111 = scalar_select %p1110, %s18, 1
      %s1112 = smul.addr %s1111, 32
      %s1113 = smul.addr %s1112, 8
      %s1114 = scalar_lea.vmem %s7, %s1113
      // Predicated region
      $region49: #{edge_information_injector_forward.3} parent=47 // pred_check
        %p1115 = pneg %p198
      $region50: #{edge_information_injector_forward.3} parent=47 // pred_check_branch
        %1117 = sbr.rel (%p1115) target = $region52
      $region51: #{edge_information_injector_forward.3} parent=47 // pred_region
        _
      $region52: #{edge_information_injector_forward.3} parent=47 // pred_fallthru
        _
    $region48: #{edge_information_injector_forward.3} parent=5 // pred_fallthru
      _
    %p1118 = scmp.le.s32.totalorder 2, %s13
    // Predicated region
    $region53: #{edge_information_injector_forward.3} parent=5 // pred_check
      %p1119 = pneg %p1118
    $region54: #{edge_information_injector_forward.3} parent=5 // pred_check_branch
      %1121 = sbr.rel (%p1119) target = $region56
    $region55: #{edge_information_injector_forward.3} parent=5 // pred_region
      %s1122 = ssub.s32 %s13, 2
      // Predicated region
      $region57: #{edge_information_injector_forward.3} parent=55 // pred_check
        %p1123 = pneg %p204
      $region58: #{edge_information_injector_forward.3} parent=55 // pred_check_branch
        %1125 = sbr.rel (%p1123) target = $region60
      $region59: #{edge_information_injector_forward.3} parent=55 // pred_region
        %p1126 = scmp.lt.s32.totalorder %s19, 1
        %s1127 = scalar_select %p1126, %s19, 1
        %s1128 = smul.addr %s1127, 32
        %s1129 = smul.addr %s1128, 8
        %s1130 = scalar_lea.vmem %s7, %s1129
      $region60: #{edge_information_injector_forward.3} parent=55 // pred_fallthru
        _
    $region56: #{edge_information_injector_forward.3} parent=5 // pred_fallthru
      _
  $region6: #{edge_information_injector_forward.3} parent=0 // loop_footer
    %s17 = sadd.s32 1, %s13
  $region7: #{edge_information_injector_forward.3} parent=0 // loop_footer_branch
    %12 = sbr.rel target = $region3
  $region8: #{edge_information_injector_forward.3} parent=0 // loop_exit
    _

</llo_original>
